<compile_context>
chip_gen: v6e
topology: v6e:2x2x1
jax: 0.10.0
libtpu: 0.0.40
codegen_flags: <defaults>
</compile_context>

<pallas_src>
import functools

import numpy as np
import jax
import jax.numpy as jnp
from jax import lax
from jax.experimental import pallas as pl
from jax.experimental.pallas import tpu as pltpu


def _silu(x):
    return x * jax.nn.sigmoid(x)


def _lane_shift(x, s):
    """y[..., m] = x[..., (m + s) % L] for a static shift s.

    Spelled as two static lane slices + a lane concat (always lowerable; the
    wrapped region is masked by the caller).  pltpu.roll is the XLU-rotate
    alternative with the same cost class.
    """
    L = x.shape[-1]
    k = s % L
    if k == 0:
        return x
    return jnp.concatenate([x[..., k:], x[..., :k]], axis=-1)


def _attention_fusion_kernel(x1_ref, x2_ref, caw1_ref, cab1_ref, caw2_ref,
                             cab2_ref, saw_ref, mask7_ref, mask3_ref,
                             cvw_ref, cvshift_ref, o_ref,
                             *, C, C4, C2, H, W):
    f32 = jnp.float32
    HW = H * W
    x1 = x1_ref[0]                                   # (C, HW) f32, lane-dense
    x2 = x2_ref[0]                                   # (C, HW)

    # ---- channel attention: GAP of the VMEM-resident x1 (no 2nd HBM pass)
    #      + squeeze-excite MLP as unrolled broadcast matvecs (tiny C).
    pooled = jnp.mean(x1, axis=-1, keepdims=True)    # (C, 1)  lane reduce
    h1 = cab1_ref[...]                               # (C4, 1)
    for c in range(C):
        h1 = h1 + caw1_ref[:, c:c + 1] * pooled[c:c + 1, :]
    h1 = _silu(_silu(h1))                            # ConvNoBN SiLU + nn.SiLU
    h2 = cab2_ref[...]                               # (C, 1)
    for j in range(C4):
        h2 = h2 + caw2_ref[:, j:j + 1] * h1[j:j + 1, :]
    ca = jax.nn.sigmoid(_silu(h2))                   # (C, 1)

    # ---- spatial attention (lane-dense): channel mean/max are sublane
    #      reductions -> (1, HW); 7x7 conv = 49 static lane shifts + border
    #      masks; folded weights are scalar loads from SMEM.
    avg = jnp.mean(x1, axis=0, keepdims=True)        # (1, HW)
    mx = jnp.max(x1, axis=0, keepdims=True)          # (1, HW)
    sa_acc = jnp.zeros((1, HW), f32)
    t = 0
    for dy in range(-3, 4):
        for dx in range(-3, 4):
            s = dy * W + dx
            term = (saw_ref[t] * _lane_shift(avg, s)
                    + saw_ref[49 + t] * _lane_shift(mx, s))
            sa_acc = sa_acc + term * mask7_ref[t:t + 1, :]
            t += 1
    sa_y = sa_acc + saw_ref[98]                      # folded BN shift
    sa = jax.nn.sigmoid(_silu(sa_y))                 # (1, HW)

    # ---- fuse the three streams: x1*ca + x1*sa + x2 == x1*(ca + sa) + x2.
    fused = x1 * (ca + sa) + x2                      # (C, HW)

    # ---- cv_out 3x3 conv (BN scale folded into cvw, shift added after).
    taps = [(dy, dx) for dy in (-1, 0, 1) for dx in (-1, 0, 1)]
    if C2 <= 16 and C <= 16:
        # Tiny channel count: scalar-weight plane MACs in (C2, HW) layout
        # (full f32, lane-dense) -- the MXU would be ~idle at K=C, M=C2.
        acc = jnp.zeros((C2, HW), f32)
        for ti, (dy, dx) in enumerate(taps):
            shifted = _lane_shift(fused, dy * W + dx) * mask3_ref[ti:ti + 1, :]
            for ci in range(C):
                j = ti * C + ci
                acc = acc + cvw_ref[:, j:j + 1] * shifted[ci:ci + 1, :]
    else:
        # Larger models: pack all 9 taps into the contraction dim and issue
        # ONE (C2, 9C) @ (9C, HW) MXU matmul (bf16 operands, f32 accumulate).
        rows = [_lane_shift(fused, dy * W + dx) * mask3_ref[ti:ti + 1, :]
                for ti, (dy, dx) in enumerate(taps)]
        slab = jnp.concatenate(rows, axis=0).astype(jnp.bfloat16)   # (9C, HW)
        acc = jnp.dot(cvw_ref[...].astype(jnp.bfloat16), slab,
                      preferred_element_type=f32)
    y = _silu(acc + cvshift_ref[...])                # (C2, HW)
    o_ref[0] = y.astype(o_ref.dtype)                 # lane-dense NCHW store


def _border_masks(H, W, r):
    """((2r+1)^2, H*W) 0/1 masks: tap (dy,dx) valid at flattened position m."""
    hw = H * W
    yy, xx = np.divmod(np.arange(hw), W)
    rows = []
    for dy in range(-r, r + 1):
        for dx in range(-r, r + 1):
            rows.append(((yy + dy >= 0) & (yy + dy < H) &
                         (xx + dx >= 0) & (xx + dx < W)).astype(np.float32))
    return jnp.asarray(np.stack(rows))


@jax.jit
def attention_fusion_forward(x1, x2, params):
    """AttentionFusion.forward((x1, x2)) with eval-mode BatchNorm. NCHW in/out."""
    eps = 1e-5
    N, C, H, W = x1.shape
    HW = H * W
    C4 = params["ca_w1"].shape[0]
    C2 = params["cv_w"].shape[0]

    # NCHW -> (N, C, H*W): free reshape; internal layout is channel-major with
    # the flattened spatial axis lane-dense (no transposes anywhere).
    x1f = x1.reshape(N, C, HW)
    x2f = x2.reshape(N, C, HW)

    # channel-attention MLP params (1x1 convs == dense layers).
    caw1 = params["ca_w1"].reshape(C4, C)
    cab1 = params["ca_b1"].reshape(C4, 1)
    caw2 = params["ca_w2"].reshape(C, C4)
    cab2 = params["ca_b2"].reshape(C, 1)

    # spatial attention: fold BN scale/shift into the 7x7 weights -> 99 scalars.
    sc_sa = params["sa_gamma"] / jnp.sqrt(params["sa_var"] + eps)       # (1,)
    w_sa = (params["sa_w"] * sc_sa[:, None, None, None])[0]             # (2,7,7)
    sa_shift = params["sa_beta"] - params["sa_mean"] * sc_sa            # (1,)
    saw = jnp.concatenate([w_sa[0].reshape(-1), w_sa[1].reshape(-1),
                           sa_shift]).astype(jnp.float32)               # (99,)

    # cv_out: fold BN scale into the 3x3 weights; column j = tap*C + ci.
    sc_cv = params["cv_gamma"] / jnp.sqrt(params["cv_var"] + eps)       # (C2,)
    w_cv = params["cv_w"] * sc_cv[:, None, None, None]                  # (C2,C,3,3)
    cvw = jnp.transpose(w_cv, (0, 2, 3, 1)).reshape(C2, 9 * C)
    cvshift = (params["cv_beta"] - params["cv_mean"] * sc_cv).reshape(C2, 1)

    mask7 = _border_masks(H, W, 3)                                       # (49, HW)
    mask3 = _border_masks(H, W, 1)                                       # (9, HW)

    kernel = functools.partial(_attention_fusion_kernel,
                               C=C, C4=C4, C2=C2, H=H, W=W)
    full = lambda n: (0, 0)

    out = pl.pallas_call(
        kernel,
        out_shape=jax.ShapeDtypeStruct((N, C2, HW), x1.dtype),
        grid=(N,),
        in_specs=[
            pl.BlockSpec((1, C, HW), lambda n: (n, 0, 0)),               # x1
            pl.BlockSpec((1, C, HW), lambda n: (n, 0, 0)),               # x2
            pl.BlockSpec((C4, C), full),                                 # ca w1
            pl.BlockSpec((C4, 1), full),                                 # ca b1
            pl.BlockSpec((C, C4), full),                                 # ca w2
            pl.BlockSpec((C, 1), full),                                  # ca b2
            pl.BlockSpec(memory_space=pltpu.MemorySpace.SMEM),           # sa weights
            pl.BlockSpec((49, HW), full),                                # 7x7 masks
            pl.BlockSpec((9, HW), full),                                 # 3x3 masks
            pl.BlockSpec((C2, 9 * C), full),                             # cv weights
            pl.BlockSpec((C2, 1), full),                                 # cv shift
        ],
        out_specs=pl.BlockSpec((1, C2, HW), lambda n: (n, 0, 0)),
        compiler_params=pltpu.CompilerParams(
            dimension_semantics=("parallel",),
            vmem_limit_bytes=32 * 1024 * 1024,   # well below v7x 64 MiB physical
        ),
    )(x1f, x2f, caw1, cab1, caw2, cab2, saw, mask7, mask3, cvw, cvshift)

    return out.reshape(N, C2, H, W)               # free reshape, already NCHW


def _reference(x1, x2, p, eps=1e-5):
    """Pure-JAX NCHW mirror of AttentionFusion.forward (eval-mode BN)."""
    dn = ("NCHW", "OIHW", "NCHW")
    # channel attention
    pooled = jnp.mean(x1, axis=(2, 3), keepdims=True)
    h = lax.conv_general_dilated(pooled, p["ca_w1"], (1, 1), "VALID",
                                 dimension_numbers=dn)
    h = _silu(_silu(h + p["ca_b1"][None, :, None, None]))
    h = lax.conv_general_dilated(h, p["ca_w2"], (1, 1), "VALID",
                                 dimension_numbers=dn)
    h = _silu(h + p["ca_b2"][None, :, None, None])
    ca = jax.nn.sigmoid(h)
    x1_ca = x1 * ca
    # spatial attention
    avg = jnp.mean(x1, axis=1, keepdims=True)
    mx = jnp.max(x1, axis=1, keepdims=True)
    sa_in = jnp.concatenate([avg, mx], axis=1)
    y = lax.conv_general_dilated(sa_in, p["sa_w"], (1, 1), [(3, 3), (3, 3)],
                                 dimension_numbers=dn)
    sc = p["sa_gamma"] / jnp.sqrt(p["sa_var"] + eps)
    y = y * sc[None, :, None, None] + (p["sa_beta"] - p["sa_mean"] * sc)[None, :, None, None]
    sa = jax.nn.sigmoid(_silu(y))
    x1_sa = x1 * sa
    # combine + cv_out
    comb = x1_ca + x1_sa + x2
    y = lax.conv_general_dilated(comb, p["cv_w"], (1, 1), [(1, 1), (1, 1)],
                                 dimension_numbers=dn)
    sc = p["cv_gamma"] / jnp.sqrt(p["cv_var"] + eps)
    y = y * sc[None, :, None, None] + (p["cv_beta"] - p["cv_mean"] * sc)[None, :, None, None]
    return _silu(y)


if __name__ == "__main__":
    key = jax.random.PRNGKey(0)
    ks = jax.random.split(key, 16)
    N, C, H, W = 2, 4, 16, 16
    C4 = max(C // 4, 1)

    def rnd(k, shape, scale=1.0):
        return scale * jax.random.normal(k, shape, dtype=jnp.float32)

    x1 = rnd(ks[0], (N, C, H, W))
    x2 = rnd(ks[1], (N, C, H, W))
    params = {
        "ca_w1": rnd(ks[2], (C4, C, 1, 1), 0.3),
        "ca_b1": rnd(ks[3], (C4,), 0.1),
        "ca_w2": rnd(ks[4], (C, C4, 1, 1), 0.3),
        "ca_b2": rnd(ks[5], (C,), 0.1),
        "sa_w": rnd(ks[6], (1, 2, 7, 7), 0.1),
        "sa_gamma": 1.0 + rnd(ks[7], (1,), 0.1),
        "sa_beta": rnd(ks[8], (1,), 0.1),
        "sa_mean": rnd(ks[9], (1,), 0.1),
        "sa_var": jnp.abs(1.0 + rnd(ks[10], (1,), 0.1)),
        "cv_w": rnd(ks[11], (C, C, 3, 3), 0.2),
        "cv_gamma": 1.0 + rnd(ks[12], (C,), 0.1),
        "cv_beta": rnd(ks[13], (C,), 0.1),
        "cv_mean": rnd(ks[14], (C,), 0.1),
        "cv_var": jnp.abs(1.0 + rnd(ks[15], (C,), 0.1)),
    }

    out = attention_fusion_forward(x1, x2, params)
    out = jax.block_until_ready(out)
    assert out.shape == (N, C, H, W)

    ref = _reference(x1, x2, params)
    # All in-kernel math for these shapes runs in f32 (VPU plane-MAC path),
    # so the tolerance can be tight.
    assert jnp.allclose(out, ref, atol=5e-3, rtol=5e-3), \
        float(jnp.max(jnp.abs(out - ref)))

    print("KERNEL_OK")
</pallas_src>

<mosaic_0001>
module attributes {stable_mosaic.version = 11 : i64} {
  func.func @_attention_fusion_kernel(%arg0: i32, %arg1: memref<1x4x256xf32, #tpu.memory_space<vmem>>, %arg2: memref<1x4x256xf32, #tpu.memory_space<vmem>>, %arg3: memref<1x4xf32, #tpu.memory_space<vmem>>, %arg4: memref<1x1xf32, #tpu.memory_space<vmem>>, %arg5: memref<4x1xf32, #tpu.memory_space<vmem>>, %arg6: memref<4x1xf32, #tpu.memory_space<vmem>>, %arg7: memref<99xf32, #tpu.memory_space<smem>>, %arg8: memref<49x256xf32, #tpu.memory_space<vmem>>, %arg9: memref<9x256xf32, #tpu.memory_space<vmem>>, %arg10: memref<4x36xf32, #tpu.memory_space<vmem>>, %arg11: memref<4x1xf32, #tpu.memory_space<vmem>>, %arg12: memref<1x4x256xf32, #tpu.memory_space<vmem>>) attributes {dimension_semantics = [#tpu.dimension_semantics<parallel>], iteration_bounds = array<i64: 2>, scalar_prefetch = 0 : i64, scratch_operands = 0 : i64, tpu.core_type = #tpu.core_type<tc>, window_params = [{transform_indices = @transform_0, window_bounds = array<i64: 1, 4, 256>}, {transform_indices = @transform_1, window_bounds = array<i64: 1, 4, 256>}, {pipeline_mode = #tpu.pipeline_mode<synchronous>, transform_indices = @transform_2, window_bounds = array<i64: 1, 4>}, {pipeline_mode = #tpu.pipeline_mode<synchronous>, transform_indices = @transform_3, window_bounds = array<i64: 1, 1>}, {pipeline_mode = #tpu.pipeline_mode<synchronous>, transform_indices = @transform_4, window_bounds = array<i64: 4, 1>}, {pipeline_mode = #tpu.pipeline_mode<synchronous>, transform_indices = @transform_5, window_bounds = array<i64: 4, 1>}, {transform_indices = @transform_6, window_bounds = array<i64: 99>}, {pipeline_mode = #tpu.pipeline_mode<synchronous>, transform_indices = @transform_7, window_bounds = array<i64: 49, 256>}, {pipeline_mode = #tpu.pipeline_mode<synchronous>, transform_indices = @transform_8, window_bounds = array<i64: 9, 256>}, {pipeline_mode = #tpu.pipeline_mode<synchronous>, transform_indices = @transform_9, window_bounds = array<i64: 4, 36>}, {pipeline_mode = #tpu.pipeline_mode<synchronous>, transform_indices = @transform_10, window_bounds = array<i64: 4, 1>}, {transform_indices = @transform_11, window_bounds = array<i64: 1, 4, 256>}]} {
    %c0 = arith.constant 0 : index
    %c0_0 = arith.constant 0 : index
    %c0_1 = arith.constant 0 : index
    %0 = vector.load %arg1[%c0, %c0_0, %c0_1] : memref<1x4x256xf32, #tpu.memory_space<vmem>>, vector<1x4x256xf32>
    %1 = vector.shape_cast %0 : vector<1x4x256xf32> to vector<4x256xf32>
    %c0_2 = arith.constant 0 : index
    %c0_3 = arith.constant 0 : index
    %c0_4 = arith.constant 0 : index
    %2 = vector.load %arg2[%c0_2, %c0_3, %c0_4] : memref<1x4x256xf32, #tpu.memory_space<vmem>>, vector<1x4x256xf32>
    %3 = vector.shape_cast %2 : vector<1x4x256xf32> to vector<4x256xf32>
    %cst = arith.constant dense<0.000000e+00> : vector<4xf32>
    %4 = vector.multi_reduction <add>, %1, %cst [1] : vector<4x256xf32> to vector<4xf32>
    %5 = vector.shape_cast %4 : vector<4xf32> to vector<4x1xf32>
    %cst_5 = arith.constant 2.560000e+02 : f32
    %6 = vector.broadcast %cst_5 : f32 to vector<4x1xf32>
    %7 = arith.divf %5, %6 : vector<4x1xf32>
    %c0_6 = arith.constant 0 : index
    %c0_7 = arith.constant 0 : index
    %8 = vector.load %arg4[%c0_6, %c0_7] : memref<1x1xf32, #tpu.memory_space<vmem>>, vector<1x1xf32>
    %c0_8 = arith.constant 0 : index
    %c0_9 = arith.constant 0 : index
    %9 = vector.load %arg3[%c0_8, %c0_9] : memref<1x4xf32, #tpu.memory_space<vmem>>, vector<1x1xf32>
    %10 = vector.extract_strided_slice %7 {offsets = [0, 0], sizes = [1, 1], strides = [1, 1]} : vector<4x1xf32> to vector<1x1xf32>
    %11 = arith.mulf %9, %10 : vector<1x1xf32>
    %12 = arith.addf %8, %11 : vector<1x1xf32>
    %c0_10 = arith.constant 0 : index
    %c1 = arith.constant 1 : index
    %13 = vector.load %arg3[%c0_10, %c1] : memref<1x4xf32, #tpu.memory_space<vmem>>, vector<1x1xf32>
    %14 = vector.extract_strided_slice %7 {offsets = [1, 0], sizes = [1, 1], strides = [1, 1]} : vector<4x1xf32> to vector<1x1xf32>
    %15 = arith.mulf %13, %14 : vector<1x1xf32>
    %16 = arith.addf %12, %15 : vector<1x1xf32>
    %c0_11 = arith.constant 0 : index
    %c2 = arith.constant 2 : index
    %17 = vector.load %arg3[%c0_11, %c2] : memref<1x4xf32, #tpu.memory_space<vmem>>, vector<1x1xf32>
    %18 = vector.extract_strided_slice %7 {offsets = [2, 0], sizes = [1, 1], strides = [1, 1]} : vector<4x1xf32> to vector<1x1xf32>
    %19 = arith.mulf %17, %18 : vector<1x1xf32>
    %20 = arith.addf %16, %19 : vector<1x1xf32>
    %c0_12 = arith.constant 0 : index
    %c3 = arith.constant 3 : index
    %21 = vector.load %arg3[%c0_12, %c3] : memref<1x4xf32, #tpu.memory_space<vmem>>, vector<1x1xf32>
    %22 = vector.extract_strided_slice %7 {offsets = [3, 0], sizes = [1, 1], strides = [1, 1]} : vector<4x1xf32> to vector<1x1xf32>
    %23 = arith.mulf %21, %22 : vector<1x1xf32>
    %24 = arith.addf %20, %23 : vector<1x1xf32>
    %25 = arith.negf %24 : vector<1x1xf32>
    %26 = math.exp %25 : vector<1x1xf32>
    %cst_13 = arith.constant 1.000000e+00 : f32
    %27 = vector.broadcast %cst_13 : f32 to vector<1x1xf32>
    %28 = arith.addf %27, %26 : vector<1x1xf32>
    %29 = arith.divf %27, %28 : vector<1x1xf32>
    %30 = arith.mulf %24, %29 : vector<1x1xf32>
    %31 = arith.negf %30 : vector<1x1xf32>
    %32 = math.exp %31 : vector<1x1xf32>
    %cst_14 = arith.constant 1.000000e+00 : f32
    %33 = vector.broadcast %cst_14 : f32 to vector<1x1xf32>
    %34 = arith.addf %33, %32 : vector<1x1xf32>
    %35 = arith.divf %33, %34 : vector<1x1xf32>
    %36 = arith.mulf %30, %35 : vector<1x1xf32>
    %c0_15 = arith.constant 0 : index
    %c0_16 = arith.constant 0 : index
    %37 = vector.load %arg6[%c0_15, %c0_16] : memref<4x1xf32, #tpu.memory_space<vmem>>, vector<4x1xf32>
    %c0_17 = arith.constant 0 : index
    %c0_18 = arith.constant 0 : index
    %38 = vector.load %arg5[%c0_17, %c0_18] : memref<4x1xf32, #tpu.memory_space<vmem>>, vector<4x1xf32>
    %39 = vector.broadcast %36 : vector<1x1xf32> to vector<4x1xf32>
    %40 = arith.mulf %38, %39 : vector<4x1xf32>
    %41 = arith.addf %37, %40 : vector<4x1xf32>
    %42 = arith.negf %41 : vector<4x1xf32>
    %43 = math.exp %42 : vector<4x1xf32>
    %cst_19 = arith.constant 1.000000e+00 : f32
    %44 = vector.broadcast %cst_19 : f32 to vector<4x1xf32>
    %45 = arith.addf %44, %43 : vector<4x1xf32>
    %46 = arith.divf %44, %45 : vector<4x1xf32>
    %47 = arith.mulf %41, %46 : vector<4x1xf32>
    %48 = arith.negf %47 : vector<4x1xf32>
    %49 = math.exp %48 : vector<4x1xf32>
    %cst_20 = arith.constant 1.000000e+00 : f32
    %50 = vector.broadcast %cst_20 : f32 to vector<4x1xf32>
    %51 = arith.addf %50, %49 : vector<4x1xf32>
    %52 = arith.divf %50, %51 : vector<4x1xf32>
    %cst_21 = arith.constant dense<0.000000e+00> : vector<256xf32>
    %53 = vector.multi_reduction <add>, %1, %cst_21 [0] : vector<4x256xf32> to vector<256xf32>
    %54 = vector.shape_cast %53 : vector<256xf32> to vector<1x256xf32>
    %cst_22 = arith.constant 4.000000e+00 : f32
    %55 = vector.broadcast %cst_22 : f32 to vector<1x256xf32>
    %56 = arith.divf %54, %55 : vector<1x256xf32>
    %cst_23 = arith.constant dense<0xFF800000> : vector<256xf32>
    %57 = vector.multi_reduction <maximumf>, %1, %cst_23 [0] : vector<4x256xf32> to vector<256xf32>
    %58 = vector.shape_cast %57 : vector<256xf32> to vector<1x256xf32>
    %cst_24 = arith.constant 0.000000e+00 : f32
    %59 = vector.broadcast %cst_24 : f32 to vector<1x256xf32>
    %c0_25 = arith.constant 0 : index
    %60 = memref.load %arg7[%c0_25] : memref<99xf32, #tpu.memory_space<smem>>
    %61 = vector.extract_strided_slice %56 {offsets = [0, 205], sizes = [1, 51], strides = [1, 1]} : vector<1x256xf32> to vector<1x51xf32>
    %62 = vector.extract_strided_slice %56 {offsets = [0, 0], sizes = [1, 205], strides = [1, 1]} : vector<1x256xf32> to vector<1x205xf32>
    %63 = tpu.concatenate %61, %62 in 1 : vector<1x51xf32>, vector<1x205xf32> -> vector<1x256xf32>
    %64 = vector.broadcast %60 : f32 to vector<1x256xf32>
    %65 = arith.mulf %64, %63 : vector<1x256xf32>
    %c49 = arith.constant 49 : index
    %66 = memref.load %arg7[%c49] : memref<99xf32, #tpu.memory_space<smem>>
    %67 = vector.extract_strided_slice %58 {offsets = [0, 205], sizes = [1, 51], strides = [1, 1]} : vector<1x256xf32> to vector<1x51xf32>
    %68 = vector.extract_strided_slice %58 {offsets = [0, 0], sizes = [1, 205], strides = [1, 1]} : vector<1x256xf32> to vector<1x205xf32>
    %69 = tpu.concatenate %67, %68 in 1 : vector<1x51xf32>, vector<1x205xf32> -> vector<1x256xf32>
    %70 = vector.broadcast %66 : f32 to vector<1x256xf32>
    %71 = arith.mulf %70, %69 : vector<1x256xf32>
    %72 = arith.addf %65, %71 : vector<1x256xf32>
    %c0_26 = arith.constant 0 : index
    %c0_27 = arith.constant 0 : index
    %73 = vector.load %arg8[%c0_26, %c0_27] : memref<49x256xf32, #tpu.memory_space<vmem>>, vector<1x256xf32>
    %74 = arith.mulf %72, %73 : vector<1x256xf32>
    %75 = arith.addf %59, %74 : vector<1x256xf32>
    %c1_28 = arith.constant 1 : index
    %76 = memref.load %arg7[%c1_28] : memref<99xf32, #tpu.memory_space<smem>>
    %77 = vector.extract_strided_slice %56 {offsets = [0, 206], sizes = [1, 50], strides = [1, 1]} : vector<1x256xf32> to vector<1x50xf32>
    %78 = vector.extract_strided_slice %56 {offsets = [0, 0], sizes = [1, 206], strides = [1, 1]} : vector<1x256xf32> to vector<1x206xf32>
    %79 = tpu.concatenate %77, %78 in 1 : vector<1x50xf32>, vector<1x206xf32> -> vector<1x256xf32>
    %80 = vector.broadcast %76 : f32 to vector<1x256xf32>
    %81 = arith.mulf %80, %79 : vector<1x256xf32>
    %c50 = arith.constant 50 : index
    %82 = memref.load %arg7[%c50] : memref<99xf32, #tpu.memory_space<smem>>
    %83 = vector.extract_strided_slice %58 {offsets = [0, 206], sizes = [1, 50], strides = [1, 1]} : vector<1x256xf32> to vector<1x50xf32>
    %84 = vector.extract_strided_slice %58 {offsets = [0, 0], sizes = [1, 206], strides = [1, 1]} : vector<1x256xf32> to vector<1x206xf32>
    %85 = tpu.concatenate %83, %84 in 1 : vector<1x50xf32>, vector<1x206xf32> -> vector<1x256xf32>
    %86 = vector.broadcast %82 : f32 to vector<1x256xf32>
    %87 = arith.mulf %86, %85 : vector<1x256xf32>
    %88 = arith.addf %81, %87 : vector<1x256xf32>
    %c1_29 = arith.constant 1 : index
    %c0_30 = arith.constant 0 : index
    %89 = vector.load %arg8[%c1_29, %c0_30] : memref<49x256xf32, #tpu.memory_space<vmem>>, vector<1x256xf32>
    %90 = arith.mulf %88, %89 : vector<1x256xf32>
    %91 = arith.addf %75, %90 : vector<1x256xf32>
    %c2_31 = arith.constant 2 : index
    %92 = memref.load %arg7[%c2_31] : memref<99xf32, #tpu.memory_space<smem>>
    %93 = vector.extract_strided_slice %56 {offsets = [0, 207], sizes = [1, 49], strides = [1, 1]} : vector<1x256xf32> to vector<1x49xf32>
    %94 = vector.extract_strided_slice %56 {offsets = [0, 0], sizes = [1, 207], strides = [1, 1]} : vector<1x256xf32> to vector<1x207xf32>
    %95 = tpu.concatenate %93, %94 in 1 : vector<1x49xf32>, vector<1x207xf32> -> vector<1x256xf32>
    %96 = vector.broadcast %92 : f32 to vector<1x256xf32>
    %97 = arith.mulf %96, %95 : vector<1x256xf32>
    %c51 = arith.constant 51 : index
    %98 = memref.load %arg7[%c51] : memref<99xf32, #tpu.memory_space<smem>>
    %99 = vector.extract_strided_slice %58 {offsets = [0, 207], sizes = [1, 49], strides = [1, 1]} : vector<1x256xf32> to vector<1x49xf32>
    %100 = vector.extract_strided_slice %58 {offsets = [0, 0], sizes = [1, 207], strides = [1, 1]} : vector<1x256xf32> to vector<1x207xf32>
    %101 = tpu.concatenate %99, %100 in 1 : vector<1x49xf32>, vector<1x207xf32> -> vector<1x256xf32>
    %102 = vector.broadcast %98 : f32 to vector<1x256xf32>
    %103 = arith.mulf %102, %101 : vector<1x256xf32>
    %104 = arith.addf %97, %103 : vector<1x256xf32>
    %c2_32 = arith.constant 2 : index
    %c0_33 = arith.constant 0 : index
    %105 = vector.load %arg8[%c2_32, %c0_33] : memref<49x256xf32, #tpu.memory_space<vmem>>, vector<1x256xf32>
    %106 = arith.mulf %104, %105 : vector<1x256xf32>
    %107 = arith.addf %91, %106 : vector<1x256xf32>
    %c3_34 = arith.constant 3 : index
    %108 = memref.load %arg7[%c3_34] : memref<99xf32, #tpu.memory_space<smem>>
    %109 = vector.extract_strided_slice %56 {offsets = [0, 208], sizes = [1, 48], strides = [1, 1]} : vector<1x256xf32> to vector<1x48xf32>
    %110 = vector.extract_strided_slice %56 {offsets = [0, 0], sizes = [1, 208], strides = [1, 1]} : vector<1x256xf32> to vector<1x208xf32>
    %111 = tpu.concatenate %109, %110 in 1 : vector<1x48xf32>, vector<1x208xf32> -> vector<1x256xf32>
    %112 = vector.broadcast %108 : f32 to vector<1x256xf32>
    %113 = arith.mulf %112, %111 : vector<1x256xf32>
    %c52 = arith.constant 52 : index
    %114 = memref.load %arg7[%c52] : memref<99xf32, #tpu.memory_space<smem>>
    %115 = vector.extract_strided_slice %58 {offsets = [0, 208], sizes = [1, 48], strides = [1, 1]} : vector<1x256xf32> to vector<1x48xf32>
    %116 = vector.extract_strided_slice %58 {offsets = [0, 0], sizes = [1, 208], strides = [1, 1]} : vector<1x256xf32> to vector<1x208xf32>
    %117 = tpu.concatenate %115, %116 in 1 : vector<1x48xf32>, vector<1x208xf32> -> vector<1x256xf32>
    %118 = vector.broadcast %114 : f32 to vector<1x256xf32>
    %119 = arith.mulf %118, %117 : vector<1x256xf32>
    %120 = arith.addf %113, %119 : vector<1x256xf32>
    %c3_35 = arith.constant 3 : index
    %c0_36 = arith.constant 0 : index
    %121 = vector.load %arg8[%c3_35, %c0_36] : memref<49x256xf32, #tpu.memory_space<vmem>>, vector<1x256xf32>
    %122 = arith.mulf %120, %121 : vector<1x256xf32>
    %123 = arith.addf %107, %122 : vector<1x256xf32>
    %c4 = arith.constant 4 : index
    %124 = memref.load %arg7[%c4] : memref<99xf32, #tpu.memory_space<smem>>
    %125 = vector.extract_strided_slice %56 {offsets = [0, 209], sizes = [1, 47], strides = [1, 1]} : vector<1x256xf32> to vector<1x47xf32>
    %126 = vector.extract_strided_slice %56 {offsets = [0, 0], sizes = [1, 209], strides = [1, 1]} : vector<1x256xf32> to vector<1x209xf32>
    %127 = tpu.concatenate %125, %126 in 1 : vector<1x47xf32>, vector<1x209xf32> -> vector<1x256xf32>
    %128 = vector.broadcast %124 : f32 to vector<1x256xf32>
    %129 = arith.mulf %128, %127 : vector<1x256xf32>
    %c53 = arith.constant 53 : index
    %130 = memref.load %arg7[%c53] : memref<99xf32, #tpu.memory_space<smem>>
    %131 = vector.extract_strided_slice %58 {offsets = [0, 209], sizes = [1, 47], strides = [1, 1]} : vector<1x256xf32> to vector<1x47xf32>
    %132 = vector.extract_strided_slice %58 {offsets = [0, 0], sizes = [1, 209], strides = [1, 1]} : vector<1x256xf32> to vector<1x209xf32>
    %133 = tpu.concatenate %131, %132 in 1 : vector<1x47xf32>, vector<1x209xf32> -> vector<1x256xf32>
    %134 = vector.broadcast %130 : f32 to vector<1x256xf32>
    %135 = arith.mulf %134, %133 : vector<1x256xf32>
    %136 = arith.addf %129, %135 : vector<1x256xf32>
    %c4_37 = arith.constant 4 : index
    %c0_38 = arith.constant 0 : index
    %137 = vector.load %arg8[%c4_37, %c0_38] : memref<49x256xf32, #tpu.memory_space<vmem>>, vector<1x256xf32>
    %138 = arith.mulf %136, %137 : vector<1x256xf32>
    %139 = arith.addf %123, %138 : vector<1x256xf32>
    %c5 = arith.constant 5 : index
    %140 = memref.load %arg7[%c5] : memref<99xf32, #tpu.memory_space<smem>>
    %141 = vector.extract_strided_slice %56 {offsets = [0, 210], sizes = [1, 46], strides = [1, 1]} : vector<1x256xf32> to vector<1x46xf32>
    %142 = vector.extract_strided_slice %56 {offsets = [0, 0], sizes = [1, 210], strides = [1, 1]} : vector<1x256xf32> to vector<1x210xf32>
    %143 = tpu.concatenate %141, %142 in 1 : vector<1x46xf32>, vector<1x210xf32> -> vector<1x256xf32>
    %144 = vector.broadcast %140 : f32 to vector<1x256xf32>
    %145 = arith.mulf %144, %143 : vector<1x256xf32>
    %c54 = arith.constant 54 : index
    %146 = memref.load %arg7[%c54] : memref<99xf32, #tpu.memory_space<smem>>
    %147 = vector.extract_strided_slice %58 {offsets = [0, 210], sizes = [1, 46], strides = [1, 1]} : vector<1x256xf32> to vector<1x46xf32>
    %148 = vector.extract_strided_slice %58 {offsets = [0, 0], sizes = [1, 210], strides = [1, 1]} : vector<1x256xf32> to vector<1x210xf32>
    %149 = tpu.concatenate %147, %148 in 1 : vector<1x46xf32>, vector<1x210xf32> -> vector<1x256xf32>
    %150 = vector.broadcast %146 : f32 to vector<1x256xf32>
    %151 = arith.mulf %150, %149 : vector<1x256xf32>
    %152 = arith.addf %145, %151 : vector<1x256xf32>
    %c5_39 = arith.constant 5 : index
    %c0_40 = arith.constant 0 : index
    %153 = vector.load %arg8[%c5_39, %c0_40] : memref<49x256xf32, #tpu.memory_space<vmem>>, vector<1x256xf32>
    %154 = arith.mulf %152, %153 : vector<1x256xf32>
    %155 = arith.addf %139, %154 : vector<1x256xf32>
    %c6 = arith.constant 6 : index
    %156 = memref.load %arg7[%c6] : memref<99xf32, #tpu.memory_space<smem>>
    %157 = vector.extract_strided_slice %56 {offsets = [0, 211], sizes = [1, 45], strides = [1, 1]} : vector<1x256xf32> to vector<1x45xf32>
    %158 = vector.extract_strided_slice %56 {offsets = [0, 0], sizes = [1, 211], strides = [1, 1]} : vector<1x256xf32> to vector<1x211xf32>
    %159 = tpu.concatenate %157, %158 in 1 : vector<1x45xf32>, vector<1x211xf32> -> vector<1x256xf32>
    %160 = vector.broadcast %156 : f32 to vector<1x256xf32>
    %161 = arith.mulf %160, %159 : vector<1x256xf32>
    %c55 = arith.constant 55 : index
    %162 = memref.load %arg7[%c55] : memref<99xf32, #tpu.memory_space<smem>>
    %163 = vector.extract_strided_slice %58 {offsets = [0, 211], sizes = [1, 45], strides = [1, 1]} : vector<1x256xf32> to vector<1x45xf32>
    %164 = vector.extract_strided_slice %58 {offsets = [0, 0], sizes = [1, 211], strides = [1, 1]} : vector<1x256xf32> to vector<1x211xf32>
    %165 = tpu.concatenate %163, %164 in 1 : vector<1x45xf32>, vector<1x211xf32> -> vector<1x256xf32>
    %166 = vector.broadcast %162 : f32 to vector<1x256xf32>
    %167 = arith.mulf %166, %165 : vector<1x256xf32>
    %168 = arith.addf %161, %167 : vector<1x256xf32>
    %c6_41 = arith.constant 6 : index
    %c0_42 = arith.constant 0 : index
    %169 = vector.load %arg8[%c6_41, %c0_42] : memref<49x256xf32, #tpu.memory_space<vmem>>, vector<1x256xf32>
    %170 = arith.mulf %168, %169 : vector<1x256xf32>
    %171 = arith.addf %155, %170 : vector<1x256xf32>
    %c7 = arith.constant 7 : index
    %172 = memref.load %arg7[%c7] : memref<99xf32, #tpu.memory_space<smem>>
    %173 = vector.extract_strided_slice %56 {offsets = [0, 221], sizes = [1, 35], strides = [1, 1]} : vector<1x256xf32> to vector<1x35xf32>
    %174 = vector.extract_strided_slice %56 {offsets = [0, 0], sizes = [1, 221], strides = [1, 1]} : vector<1x256xf32> to vector<1x221xf32>
    %175 = tpu.concatenate %173, %174 in 1 : vector<1x35xf32>, vector<1x221xf32> -> vector<1x256xf32>
    %176 = vector.broadcast %172 : f32 to vector<1x256xf32>
    %177 = arith.mulf %176, %175 : vector<1x256xf32>
    %c56 = arith.constant 56 : index
    %178 = memref.load %arg7[%c56] : memref<99xf32, #tpu.memory_space<smem>>
    %179 = vector.extract_strided_slice %58 {offsets = [0, 221], sizes = [1, 35], strides = [1, 1]} : vector<1x256xf32> to vector<1x35xf32>
    %180 = vector.extract_strided_slice %58 {offsets = [0, 0], sizes = [1, 221], strides = [1, 1]} : vector<1x256xf32> to vector<1x221xf32>
    %181 = tpu.concatenate %179, %180 in 1 : vector<1x35xf32>, vector<1x221xf32> -> vector<1x256xf32>
    %182 = vector.broadcast %178 : f32 to vector<1x256xf32>
    %183 = arith.mulf %182, %181 : vector<1x256xf32>
    %184 = arith.addf %177, %183 : vector<1x256xf32>
    %c7_43 = arith.constant 7 : index
    %c0_44 = arith.constant 0 : index
    %185 = vector.load %arg8[%c7_43, %c0_44] : memref<49x256xf32, #tpu.memory_space<vmem>>, vector<1x256xf32>
    %186 = arith.mulf %184, %185 : vector<1x256xf32>
    %187 = arith.addf %171, %186 : vector<1x256xf32>
    %c8 = arith.constant 8 : index
    %188 = memref.load %arg7[%c8] : memref<99xf32, #tpu.memory_space<smem>>
    %189 = vector.extract_strided_slice %56 {offsets = [0, 222], sizes = [1, 34], strides = [1, 1]} : vector<1x256xf32> to vector<1x34xf32>
    %190 = vector.extract_strided_slice %56 {offsets = [0, 0], sizes = [1, 222], strides = [1, 1]} : vector<1x256xf32> to vector<1x222xf32>
    %191 = tpu.concatenate %189, %190 in 1 : vector<1x34xf32>, vector<1x222xf32> -> vector<1x256xf32>
    %192 = vector.broadcast %188 : f32 to vector<1x256xf32>
    %193 = arith.mulf %192, %191 : vector<1x256xf32>
    %c57 = arith.constant 57 : index
    %194 = memref.load %arg7[%c57] : memref<99xf32, #tpu.memory_space<smem>>
    %195 = vector.extract_strided_slice %58 {offsets = [0, 222], sizes = [1, 34], strides = [1, 1]} : vector<1x256xf32> to vector<1x34xf32>
    %196 = vector.extract_strided_slice %58 {offsets = [0, 0], sizes = [1, 222], strides = [1, 1]} : vector<1x256xf32> to vector<1x222xf32>
    %197 = tpu.concatenate %195, %196 in 1 : vector<1x34xf32>, vector<1x222xf32> -> vector<1x256xf32>
    %198 = vector.broadcast %194 : f32 to vector<1x256xf32>
    %199 = arith.mulf %198, %197 : vector<1x256xf32>
    %200 = arith.addf %193, %199 : vector<1x256xf32>
    %c8_45 = arith.constant 8 : index
    %c0_46 = arith.constant 0 : index
    %201 = vector.load %arg8[%c8_45, %c0_46] : memref<49x256xf32, #tpu.memory_space<vmem>>, vector<1x256xf32>
    %202 = arith.mulf %200, %201 : vector<1x256xf32>
    %203 = arith.addf %187, %202 : vector<1x256xf32>
    %c9 = arith.constant 9 : index
    %204 = memref.load %arg7[%c9] : memref<99xf32, #tpu.memory_space<smem>>
    %205 = vector.extract_strided_slice %56 {offsets = [0, 223], sizes = [1, 33], strides = [1, 1]} : vector<1x256xf32> to vector<1x33xf32>
    %206 = vector.extract_strided_slice %56 {offsets = [0, 0], sizes = [1, 223], strides = [1, 1]} : vector<1x256xf32> to vector<1x223xf32>
    %207 = tpu.concatenate %205, %206 in 1 : vector<1x33xf32>, vector<1x223xf32> -> vector<1x256xf32>
    %208 = vector.broadcast %204 : f32 to vector<1x256xf32>
    %209 = arith.mulf %208, %207 : vector<1x256xf32>
    %c58 = arith.constant 58 : index
    %210 = memref.load %arg7[%c58] : memref<99xf32, #tpu.memory_space<smem>>
    %211 = vector.extract_strided_slice %58 {offsets = [0, 223], sizes = [1, 33], strides = [1, 1]} : vector<1x256xf32> to vector<1x33xf32>
    %212 = vector.extract_strided_slice %58 {offsets = [0, 0], sizes = [1, 223], strides = [1, 1]} : vector<1x256xf32> to vector<1x223xf32>
    %213 = tpu.concatenate %211, %212 in 1 : vector<1x33xf32>, vector<1x223xf32> -> vector<1x256xf32>
    %214 = vector.broadcast %210 : f32 to vector<1x256xf32>
    %215 = arith.mulf %214, %213 : vector<1x256xf32>
    %216 = arith.addf %209, %215 : vector<1x256xf32>
    %c9_47 = arith.constant 9 : index
    %c0_48 = arith.constant 0 : index
    %217 = vector.load %arg8[%c9_47, %c0_48] : memref<49x256xf32, #tpu.memory_space<vmem>>, vector<1x256xf32>
    %218 = arith.mulf %216, %217 : vector<1x256xf32>
    %219 = arith.addf %203, %218 : vector<1x256xf32>
    %c10 = arith.constant 10 : index
    %220 = memref.load %arg7[%c10] : memref<99xf32, #tpu.memory_space<smem>>
    %221 = vector.extract_strided_slice %56 {offsets = [0, 224], sizes = [1, 32], strides = [1, 1]} : vector<1x256xf32> to vector<1x32xf32>
    %222 = vector.extract_strided_slice %56 {offsets = [0, 0], sizes = [1, 224], strides = [1, 1]} : vector<1x256xf32> to vector<1x224xf32>
    %223 = tpu.concatenate %221, %222 in 1 : vector<1x32xf32>, vector<1x224xf32> -> vector<1x256xf32>
    %224 = vector.broadcast %220 : f32 to vector<1x256xf32>
    %225 = arith.mulf %224, %223 : vector<1x256xf32>
    %c59 = arith.constant 59 : index
    %226 = memref.load %arg7[%c59] : memref<99xf32, #tpu.memory_space<smem>>
    %227 = vector.extract_strided_slice %58 {offsets = [0, 224], sizes = [1, 32], strides = [1, 1]} : vector<1x256xf32> to vector<1x32xf32>
    %228 = vector.extract_strided_slice %58 {offsets = [0, 0], sizes = [1, 224], strides = [1, 1]} : vector<1x256xf32> to vector<1x224xf32>
    %229 = tpu.concatenate %227, %228 in 1 : vector<1x32xf32>, vector<1x224xf32> -> vector<1x256xf32>
    %230 = vector.broadcast %226 : f32 to vector<1x256xf32>
    %231 = arith.mulf %230, %229 : vector<1x256xf32>
    %232 = arith.addf %225, %231 : vector<1x256xf32>
    %c10_49 = arith.constant 10 : index
    %c0_50 = arith.constant 0 : index
    %233 = vector.load %arg8[%c10_49, %c0_50] : memref<49x256xf32, #tpu.memory_space<vmem>>, vector<1x256xf32>
    %234 = arith.mulf %232, %233 : vector<1x256xf32>
    %235 = arith.addf %219, %234 : vector<1x256xf32>
    %c11 = arith.constant 11 : index
    %236 = memref.load %arg7[%c11] : memref<99xf32, #tpu.memory_space<smem>>
    %237 = vector.extract_strided_slice %56 {offsets = [0, 225], sizes = [1, 31], strides = [1, 1]} : vector<1x256xf32> to vector<1x31xf32>
    %238 = vector.extract_strided_slice %56 {offsets = [0, 0], sizes = [1, 225], strides = [1, 1]} : vector<1x256xf32> to vector<1x225xf32>
    %239 = tpu.concatenate %237, %238 in 1 : vector<1x31xf32>, vector<1x225xf32> -> vector<1x256xf32>
    %240 = vector.broadcast %236 : f32 to vector<1x256xf32>
    %241 = arith.mulf %240, %239 : vector<1x256xf32>
    %c60 = arith.constant 60 : index
    %242 = memref.load %arg7[%c60] : memref<99xf32, #tpu.memory_space<smem>>
    %243 = vector.extract_strided_slice %58 {offsets = [0, 225], sizes = [1, 31], strides = [1, 1]} : vector<1x256xf32> to vector<1x31xf32>
    %244 = vector.extract_strided_slice %58 {offsets = [0, 0], sizes = [1, 225], strides = [1, 1]} : vector<1x256xf32> to vector<1x225xf32>
    %245 = tpu.concatenate %243, %244 in 1 : vector<1x31xf32>, vector<1x225xf32> -> vector<1x256xf32>
    %246 = vector.broadcast %242 : f32 to vector<1x256xf32>
    %247 = arith.mulf %246, %245 : vector<1x256xf32>
    %248 = arith.addf %241, %247 : vector<1x256xf32>
    %c11_51 = arith.constant 11 : index
    %c0_52 = arith.constant 0 : index
    %249 = vector.load %arg8[%c11_51, %c0_52] : memref<49x256xf32, #tpu.memory_space<vmem>>, vector<1x256xf32>
    %250 = arith.mulf %248, %249 : vector<1x256xf32>
    %251 = arith.addf %235, %250 : vector<1x256xf32>
    %c12 = arith.constant 12 : index
    %252 = memref.load %arg7[%c12] : memref<99xf32, #tpu.memory_space<smem>>
    %253 = vector.extract_strided_slice %56 {offsets = [0, 226], sizes = [1, 30], strides = [1, 1]} : vector<1x256xf32> to vector<1x30xf32>
    %254 = vector.extract_strided_slice %56 {offsets = [0, 0], sizes = [1, 226], strides = [1, 1]} : vector<1x256xf32> to vector<1x226xf32>
    %255 = tpu.concatenate %253, %254 in 1 : vector<1x30xf32>, vector<1x226xf32> -> vector<1x256xf32>
    %256 = vector.broadcast %252 : f32 to vector<1x256xf32>
    %257 = arith.mulf %256, %255 : vector<1x256xf32>
    %c61 = arith.constant 61 : index
    %258 = memref.load %arg7[%c61] : memref<99xf32, #tpu.memory_space<smem>>
    %259 = vector.extract_strided_slice %58 {offsets = [0, 226], sizes = [1, 30], strides = [1, 1]} : vector<1x256xf32> to vector<1x30xf32>
    %260 = vector.extract_strided_slice %58 {offsets = [0, 0], sizes = [1, 226], strides = [1, 1]} : vector<1x256xf32> to vector<1x226xf32>
    %261 = tpu.concatenate %259, %260 in 1 : vector<1x30xf32>, vector<1x226xf32> -> vector<1x256xf32>
    %262 = vector.broadcast %258 : f32 to vector<1x256xf32>
    %263 = arith.mulf %262, %261 : vector<1x256xf32>
    %264 = arith.addf %257, %263 : vector<1x256xf32>
    %c12_53 = arith.constant 12 : index
    %c0_54 = arith.constant 0 : index
    %265 = vector.load %arg8[%c12_53, %c0_54] : memref<49x256xf32, #tpu.memory_space<vmem>>, vector<1x256xf32>
    %266 = arith.mulf %264, %265 : vector<1x256xf32>
    %267 = arith.addf %251, %266 : vector<1x256xf32>
    %c13 = arith.constant 13 : index
    %268 = memref.load %arg7[%c13] : memref<99xf32, #tpu.memory_space<smem>>
    %269 = vector.extract_strided_slice %56 {offsets = [0, 227], sizes = [1, 29], strides = [1, 1]} : vector<1x256xf32> to vector<1x29xf32>
    %270 = vector.extract_strided_slice %56 {offsets = [0, 0], sizes = [1, 227], strides = [1, 1]} : vector<1x256xf32> to vector<1x227xf32>
    %271 = tpu.concatenate %269, %270 in 1 : vector<1x29xf32>, vector<1x227xf32> -> vector<1x256xf32>
    %272 = vector.broadcast %268 : f32 to vector<1x256xf32>
    %273 = arith.mulf %272, %271 : vector<1x256xf32>
    %c62 = arith.constant 62 : index
    %274 = memref.load %arg7[%c62] : memref<99xf32, #tpu.memory_space<smem>>
    %275 = vector.extract_strided_slice %58 {offsets = [0, 227], sizes = [1, 29], strides = [1, 1]} : vector<1x256xf32> to vector<1x29xf32>
    %276 = vector.extract_strided_slice %58 {offsets = [0, 0], sizes = [1, 227], strides = [1, 1]} : vector<1x256xf32> to vector<1x227xf32>
    %277 = tpu.concatenate %275, %276 in 1 : vector<1x29xf32>, vector<1x227xf32> -> vector<1x256xf32>
    %278 = vector.broadcast %274 : f32 to vector<1x256xf32>
    %279 = arith.mulf %278, %277 : vector<1x256xf32>
    %280 = arith.addf %273, %279 : vector<1x256xf32>
    %c13_55 = arith.constant 13 : index
    %c0_56 = arith.constant 0 : index
    %281 = vector.load %arg8[%c13_55, %c0_56] : memref<49x256xf32, #tpu.memory_space<vmem>>, vector<1x256xf32>
    %282 = arith.mulf %280, %281 : vector<1x256xf32>
    %283 = arith.addf %267, %282 : vector<1x256xf32>
    %c14 = arith.constant 14 : index
    %284 = memref.load %arg7[%c14] : memref<99xf32, #tpu.memory_space<smem>>
    %285 = vector.extract_strided_slice %56 {offsets = [0, 237], sizes = [1, 19], strides = [1, 1]} : vector<1x256xf32> to vector<1x19xf32>
    %286 = vector.extract_strided_slice %56 {offsets = [0, 0], sizes = [1, 237], strides = [1, 1]} : vector<1x256xf32> to vector<1x237xf32>
    %287 = tpu.concatenate %285, %286 in 1 : vector<1x19xf32>, vector<1x237xf32> -> vector<1x256xf32>
    %288 = vector.broadcast %284 : f32 to vector<1x256xf32>
    %289 = arith.mulf %288, %287 : vector<1x256xf32>
    %c63 = arith.constant 63 : index
    %290 = memref.load %arg7[%c63] : memref<99xf32, #tpu.memory_space<smem>>
    %291 = vector.extract_strided_slice %58 {offsets = [0, 237], sizes = [1, 19], strides = [1, 1]} : vector<1x256xf32> to vector<1x19xf32>
    %292 = vector.extract_strided_slice %58 {offsets = [0, 0], sizes = [1, 237], strides = [1, 1]} : vector<1x256xf32> to vector<1x237xf32>
    %293 = tpu.concatenate %291, %292 in 1 : vector<1x19xf32>, vector<1x237xf32> -> vector<1x256xf32>
    %294 = vector.broadcast %290 : f32 to vector<1x256xf32>
    %295 = arith.mulf %294, %293 : vector<1x256xf32>
    %296 = arith.addf %289, %295 : vector<1x256xf32>
    %c14_57 = arith.constant 14 : index
    %c0_58 = arith.constant 0 : index
    %297 = vector.load %arg8[%c14_57, %c0_58] : memref<49x256xf32, #tpu.memory_space<vmem>>, vector<1x256xf32>
    %298 = arith.mulf %296, %297 : vector<1x256xf32>
    %299 = arith.addf %283, %298 : vector<1x256xf32>
    %c15 = arith.constant 15 : index
    %300 = memref.load %arg7[%c15] : memref<99xf32, #tpu.memory_space<smem>>
    %301 = vector.extract_strided_slice %56 {offsets = [0, 238], sizes = [1, 18], strides = [1, 1]} : vector<1x256xf32> to vector<1x18xf32>
    %302 = vector.extract_strided_slice %56 {offsets = [0, 0], sizes = [1, 238], strides = [1, 1]} : vector<1x256xf32> to vector<1x238xf32>
    %303 = tpu.concatenate %301, %302 in 1 : vector<1x18xf32>, vector<1x238xf32> -> vector<1x256xf32>
    %304 = vector.broadcast %300 : f32 to vector<1x256xf32>
    %305 = arith.mulf %304, %303 : vector<1x256xf32>
    %c64 = arith.constant 64 : index
    %306 = memref.load %arg7[%c64] : memref<99xf32, #tpu.memory_space<smem>>
    %307 = vector.extract_strided_slice %58 {offsets = [0, 238], sizes = [1, 18], strides = [1, 1]} : vector<1x256xf32> to vector<1x18xf32>
    %308 = vector.extract_strided_slice %58 {offsets = [0, 0], sizes = [1, 238], strides = [1, 1]} : vector<1x256xf32> to vector<1x238xf32>
    %309 = tpu.concatenate %307, %308 in 1 : vector<1x18xf32>, vector<1x238xf32> -> vector<1x256xf32>
    %310 = vector.broadcast %306 : f32 to vector<1x256xf32>
    %311 = arith.mulf %310, %309 : vector<1x256xf32>
    %312 = arith.addf %305, %311 : vector<1x256xf32>
    %c15_59 = arith.constant 15 : index
    %c0_60 = arith.constant 0 : index
    %313 = vector.load %arg8[%c15_59, %c0_60] : memref<49x256xf32, #tpu.memory_space<vmem>>, vector<1x256xf32>
    %314 = arith.mulf %312, %313 : vector<1x256xf32>
    %315 = arith.addf %299, %314 : vector<1x256xf32>
    %c16 = arith.constant 16 : index
    %316 = memref.load %arg7[%c16] : memref<99xf32, #tpu.memory_space<smem>>
    %317 = vector.extract_strided_slice %56 {offsets = [0, 239], sizes = [1, 17], strides = [1, 1]} : vector<1x256xf32> to vector<1x17xf32>
    %318 = vector.extract_strided_slice %56 {offsets = [0, 0], sizes = [1, 239], strides = [1, 1]} : vector<1x256xf32> to vector<1x239xf32>
    %319 = tpu.concatenate %317, %318 in 1 : vector<1x17xf32>, vector<1x239xf32> -> vector<1x256xf32>
    %320 = vector.broadcast %316 : f32 to vector<1x256xf32>
    %321 = arith.mulf %320, %319 : vector<1x256xf32>
    %c65 = arith.constant 65 : index
    %322 = memref.load %arg7[%c65] : memref<99xf32, #tpu.memory_space<smem>>
    %323 = vector.extract_strided_slice %58 {offsets = [0, 239], sizes = [1, 17], strides = [1, 1]} : vector<1x256xf32> to vector<1x17xf32>
    %324 = vector.extract_strided_slice %58 {offsets = [0, 0], sizes = [1, 239], strides = [1, 1]} : vector<1x256xf32> to vector<1x239xf32>
    %325 = tpu.concatenate %323, %324 in 1 : vector<1x17xf32>, vector<1x239xf32> -> vector<1x256xf32>
    %326 = vector.broadcast %322 : f32 to vector<1x256xf32>
    %327 = arith.mulf %326, %325 : vector<1x256xf32>
    %328 = arith.addf %321, %327 : vector<1x256xf32>
    %c16_61 = arith.constant 16 : index
    %c0_62 = arith.constant 0 : index
    %329 = vector.load %arg8[%c16_61, %c0_62] : memref<49x256xf32, #tpu.memory_space<vmem>>, vector<1x256xf32>
    %330 = arith.mulf %328, %329 : vector<1x256xf32>
    %331 = arith.addf %315, %330 : vector<1x256xf32>
    %c17 = arith.constant 17 : index
    %332 = memref.load %arg7[%c17] : memref<99xf32, #tpu.memory_space<smem>>
    %333 = vector.extract_strided_slice %56 {offsets = [0, 240], sizes = [1, 16], strides = [1, 1]} : vector<1x256xf32> to vector<1x16xf32>
    %334 = vector.extract_strided_slice %56 {offsets = [0, 0], sizes = [1, 240], strides = [1, 1]} : vector<1x256xf32> to vector<1x240xf32>
    %335 = tpu.concatenate %333, %334 in 1 : vector<1x16xf32>, vector<1x240xf32> -> vector<1x256xf32>
    %336 = vector.broadcast %332 : f32 to vector<1x256xf32>
    %337 = arith.mulf %336, %335 : vector<1x256xf32>
    %c66 = arith.constant 66 : index
    %338 = memref.load %arg7[%c66] : memref<99xf32, #tpu.memory_space<smem>>
    %339 = vector.extract_strided_slice %58 {offsets = [0, 240], sizes = [1, 16], strides = [1, 1]} : vector<1x256xf32> to vector<1x16xf32>
    %340 = vector.extract_strided_slice %58 {offsets = [0, 0], sizes = [1, 240], strides = [1, 1]} : vector<1x256xf32> to vector<1x240xf32>
    %341 = tpu.concatenate %339, %340 in 1 : vector<1x16xf32>, vector<1x240xf32> -> vector<1x256xf32>
    %342 = vector.broadcast %338 : f32 to vector<1x256xf32>
    %343 = arith.mulf %342, %341 : vector<1x256xf32>
    %344 = arith.addf %337, %343 : vector<1x256xf32>
    %c17_63 = arith.constant 17 : index
    %c0_64 = arith.constant 0 : index
    %345 = vector.load %arg8[%c17_63, %c0_64] : memref<49x256xf32, #tpu.memory_space<vmem>>, vector<1x256xf32>
    %346 = arith.mulf %344, %345 : vector<1x256xf32>
    %347 = arith.addf %331, %346 : vector<1x256xf32>
    %c18 = arith.constant 18 : index
    %348 = memref.load %arg7[%c18] : memref<99xf32, #tpu.memory_space<smem>>
    %349 = vector.extract_strided_slice %56 {offsets = [0, 241], sizes = [1, 15], strides = [1, 1]} : vector<1x256xf32> to vector<1x15xf32>
    %350 = vector.extract_strided_slice %56 {offsets = [0, 0], sizes = [1, 241], strides = [1, 1]} : vector<1x256xf32> to vector<1x241xf32>
    %351 = tpu.concatenate %349, %350 in 1 : vector<1x15xf32>, vector<1x241xf32> -> vector<1x256xf32>
    %352 = vector.broadcast %348 : f32 to vector<1x256xf32>
    %353 = arith.mulf %352, %351 : vector<1x256xf32>
    %c67 = arith.constant 67 : index
    %354 = memref.load %arg7[%c67] : memref<99xf32, #tpu.memory_space<smem>>
    %355 = vector.extract_strided_slice %58 {offsets = [0, 241], sizes = [1, 15], strides = [1, 1]} : vector<1x256xf32> to vector<1x15xf32>
    %356 = vector.extract_strided_slice %58 {offsets = [0, 0], sizes = [1, 241], strides = [1, 1]} : vector<1x256xf32> to vector<1x241xf32>
    %357 = tpu.concatenate %355, %356 in 1 : vector<1x15xf32>, vector<1x241xf32> -> vector<1x256xf32>
    %358 = vector.broadcast %354 : f32 to vector<1x256xf32>
    %359 = arith.mulf %358, %357 : vector<1x256xf32>
    %360 = arith.addf %353, %359 : vector<1x256xf32>
    %c18_65 = arith.constant 18 : index
    %c0_66 = arith.constant 0 : index
    %361 = vector.load %arg8[%c18_65, %c0_66] : memref<49x256xf32, #tpu.memory_space<vmem>>, vector<1x256xf32>
    %362 = arith.mulf %360, %361 : vector<1x256xf32>
    %363 = arith.addf %347, %362 : vector<1x256xf32>
    %c19 = arith.constant 19 : index
    %364 = memref.load %arg7[%c19] : memref<99xf32, #tpu.memory_space<smem>>
    %365 = vector.extract_strided_slice %56 {offsets = [0, 242], sizes = [1, 14], strides = [1, 1]} : vector<1x256xf32> to vector<1x14xf32>
    %366 = vector.extract_strided_slice %56 {offsets = [0, 0], sizes = [1, 242], strides = [1, 1]} : vector<1x256xf32> to vector<1x242xf32>
    %367 = tpu.concatenate %365, %366 in 1 : vector<1x14xf32>, vector<1x242xf32> -> vector<1x256xf32>
    %368 = vector.broadcast %364 : f32 to vector<1x256xf32>
    %369 = arith.mulf %368, %367 : vector<1x256xf32>
    %c68 = arith.constant 68 : index
    %370 = memref.load %arg7[%c68] : memref<99xf32, #tpu.memory_space<smem>>
    %371 = vector.extract_strided_slice %58 {offsets = [0, 242], sizes = [1, 14], strides = [1, 1]} : vector<1x256xf32> to vector<1x14xf32>
    %372 = vector.extract_strided_slice %58 {offsets = [0, 0], sizes = [1, 242], strides = [1, 1]} : vector<1x256xf32> to vector<1x242xf32>
    %373 = tpu.concatenate %371, %372 in 1 : vector<1x14xf32>, vector<1x242xf32> -> vector<1x256xf32>
    %374 = vector.broadcast %370 : f32 to vector<1x256xf32>
    %375 = arith.mulf %374, %373 : vector<1x256xf32>
    %376 = arith.addf %369, %375 : vector<1x256xf32>
    %c19_67 = arith.constant 19 : index
    %c0_68 = arith.constant 0 : index
    %377 = vector.load %arg8[%c19_67, %c0_68] : memref<49x256xf32, #tpu.memory_space<vmem>>, vector<1x256xf32>
    %378 = arith.mulf %376, %377 : vector<1x256xf32>
    %379 = arith.addf %363, %378 : vector<1x256xf32>
    %c20 = arith.constant 20 : index
    %380 = memref.load %arg7[%c20] : memref<99xf32, #tpu.memory_space<smem>>
    %381 = vector.extract_strided_slice %56 {offsets = [0, 243], sizes = [1, 13], strides = [1, 1]} : vector<1x256xf32> to vector<1x13xf32>
    %382 = vector.extract_strided_slice %56 {offsets = [0, 0], sizes = [1, 243], strides = [1, 1]} : vector<1x256xf32> to vector<1x243xf32>
    %383 = tpu.concatenate %381, %382 in 1 : vector<1x13xf32>, vector<1x243xf32> -> vector<1x256xf32>
    %384 = vector.broadcast %380 : f32 to vector<1x256xf32>
    %385 = arith.mulf %384, %383 : vector<1x256xf32>
    %c69 = arith.constant 69 : index
    %386 = memref.load %arg7[%c69] : memref<99xf32, #tpu.memory_space<smem>>
    %387 = vector.extract_strided_slice %58 {offsets = [0, 243], sizes = [1, 13], strides = [1, 1]} : vector<1x256xf32> to vector<1x13xf32>
    %388 = vector.extract_strided_slice %58 {offsets = [0, 0], sizes = [1, 243], strides = [1, 1]} : vector<1x256xf32> to vector<1x243xf32>
    %389 = tpu.concatenate %387, %388 in 1 : vector<1x13xf32>, vector<1x243xf32> -> vector<1x256xf32>
    %390 = vector.broadcast %386 : f32 to vector<1x256xf32>
    %391 = arith.mulf %390, %389 : vector<1x256xf32>
    %392 = arith.addf %385, %391 : vector<1x256xf32>
    %c20_69 = arith.constant 20 : index
    %c0_70 = arith.constant 0 : index
    %393 = vector.load %arg8[%c20_69, %c0_70] : memref<49x256xf32, #tpu.memory_space<vmem>>, vector<1x256xf32>
    %394 = arith.mulf %392, %393 : vector<1x256xf32>
    %395 = arith.addf %379, %394 : vector<1x256xf32>
    %c21 = arith.constant 21 : index
    %396 = memref.load %arg7[%c21] : memref<99xf32, #tpu.memory_space<smem>>
    %397 = vector.extract_strided_slice %56 {offsets = [0, 253], sizes = [1, 3], strides = [1, 1]} : vector<1x256xf32> to vector<1x3xf32>
    %398 = vector.extract_strided_slice %56 {offsets = [0, 0], sizes = [1, 253], strides = [1, 1]} : vector<1x256xf32> to vector<1x253xf32>
    %399 = tpu.concatenate %397, %398 in 1 : vector<1x3xf32>, vector<1x253xf32> -> vector<1x256xf32>
    %400 = vector.broadcast %396 : f32 to vector<1x256xf32>
    %401 = arith.mulf %400, %399 : vector<1x256xf32>
    %c70 = arith.constant 70 : index
    %402 = memref.load %arg7[%c70] : memref<99xf32, #tpu.memory_space<smem>>
    %403 = vector.extract_strided_slice %58 {offsets = [0, 253], sizes = [1, 3], strides = [1, 1]} : vector<1x256xf32> to vector<1x3xf32>
    %404 = vector.extract_strided_slice %58 {offsets = [0, 0], sizes = [1, 253], strides = [1, 1]} : vector<1x256xf32> to vector<1x253xf32>
    %405 = tpu.concatenate %403, %404 in 1 : vector<1x3xf32>, vector<1x253xf32> -> vector<1x256xf32>
    %406 = vector.broadcast %402 : f32 to vector<1x256xf32>
    %407 = arith.mulf %406, %405 : vector<1x256xf32>
    %408 = arith.addf %401, %407 : vector<1x256xf32>
    %c21_71 = arith.constant 21 : index
    %c0_72 = arith.constant 0 : index
    %409 = vector.load %arg8[%c21_71, %c0_72] : memref<49x256xf32, #tpu.memory_space<vmem>>, vector<1x256xf32>
    %410 = arith.mulf %408, %409 : vector<1x256xf32>
    %411 = arith.addf %395, %410 : vector<1x256xf32>
    %c22 = arith.constant 22 : index
    %412 = memref.load %arg7[%c22] : memref<99xf32, #tpu.memory_space<smem>>
    %413 = vector.extract_strided_slice %56 {offsets = [0, 254], sizes = [1, 2], strides = [1, 1]} : vector<1x256xf32> to vector<1x2xf32>
    %414 = vector.extract_strided_slice %56 {offsets = [0, 0], sizes = [1, 254], strides = [1, 1]} : vector<1x256xf32> to vector<1x254xf32>
    %415 = tpu.concatenate %413, %414 in 1 : vector<1x2xf32>, vector<1x254xf32> -> vector<1x256xf32>
    %416 = vector.broadcast %412 : f32 to vector<1x256xf32>
    %417 = arith.mulf %416, %415 : vector<1x256xf32>
    %c71 = arith.constant 71 : index
    %418 = memref.load %arg7[%c71] : memref<99xf32, #tpu.memory_space<smem>>
    %419 = vector.extract_strided_slice %58 {offsets = [0, 254], sizes = [1, 2], strides = [1, 1]} : vector<1x256xf32> to vector<1x2xf32>
    %420 = vector.extract_strided_slice %58 {offsets = [0, 0], sizes = [1, 254], strides = [1, 1]} : vector<1x256xf32> to vector<1x254xf32>
    %421 = tpu.concatenate %419, %420 in 1 : vector<1x2xf32>, vector<1x254xf32> -> vector<1x256xf32>
    %422 = vector.broadcast %418 : f32 to vector<1x256xf32>
    %423 = arith.mulf %422, %421 : vector<1x256xf32>
    %424 = arith.addf %417, %423 : vector<1x256xf32>
    %c22_73 = arith.constant 22 : index
    %c0_74 = arith.constant 0 : index
    %425 = vector.load %arg8[%c22_73, %c0_74] : memref<49x256xf32, #tpu.memory_space<vmem>>, vector<1x256xf32>
    %426 = arith.mulf %424, %425 : vector<1x256xf32>
    %427 = arith.addf %411, %426 : vector<1x256xf32>
    %c23 = arith.constant 23 : index
    %428 = memref.load %arg7[%c23] : memref<99xf32, #tpu.memory_space<smem>>
    %429 = vector.extract_strided_slice %56 {offsets = [0, 255], sizes = [1, 1], strides = [1, 1]} : vector<1x256xf32> to vector<1x1xf32>
    %430 = vector.extract_strided_slice %56 {offsets = [0, 0], sizes = [1, 255], strides = [1, 1]} : vector<1x256xf32> to vector<1x255xf32>
    %431 = tpu.concatenate %429, %430 in 1 : vector<1x1xf32>, vector<1x255xf32> -> vector<1x256xf32>
    %432 = vector.broadcast %428 : f32 to vector<1x256xf32>
    %433 = arith.mulf %432, %431 : vector<1x256xf32>
    %c72 = arith.constant 72 : index
    %434 = memref.load %arg7[%c72] : memref<99xf32, #tpu.memory_space<smem>>
    %435 = vector.extract_strided_slice %58 {offsets = [0, 255], sizes = [1, 1], strides = [1, 1]} : vector<1x256xf32> to vector<1x1xf32>
    %436 = vector.extract_strided_slice %58 {offsets = [0, 0], sizes = [1, 255], strides = [1, 1]} : vector<1x256xf32> to vector<1x255xf32>
    %437 = tpu.concatenate %435, %436 in 1 : vector<1x1xf32>, vector<1x255xf32> -> vector<1x256xf32>
    %438 = vector.broadcast %434 : f32 to vector<1x256xf32>
    %439 = arith.mulf %438, %437 : vector<1x256xf32>
    %440 = arith.addf %433, %439 : vector<1x256xf32>
    %c23_75 = arith.constant 23 : index
    %c0_76 = arith.constant 0 : index
    %441 = vector.load %arg8[%c23_75, %c0_76] : memref<49x256xf32, #tpu.memory_space<vmem>>, vector<1x256xf32>
    %442 = arith.mulf %440, %441 : vector<1x256xf32>
    %443 = arith.addf %427, %442 : vector<1x256xf32>
    %c24 = arith.constant 24 : index
    %444 = memref.load %arg7[%c24] : memref<99xf32, #tpu.memory_space<smem>>
    %445 = vector.broadcast %444 : f32 to vector<1x256xf32>
    %446 = arith.mulf %445, %56 : vector<1x256xf32>
    %c73 = arith.constant 73 : index
    %447 = memref.load %arg7[%c73] : memref<99xf32, #tpu.memory_space<smem>>
    %448 = vector.broadcast %447 : f32 to vector<1x256xf32>
    %449 = arith.mulf %448, %58 : vector<1x256xf32>
    %450 = arith.addf %446, %449 : vector<1x256xf32>
    %c24_77 = arith.constant 24 : index
    %c0_78 = arith.constant 0 : index
    %451 = vector.load %arg8[%c24_77, %c0_78] : memref<49x256xf32, #tpu.memory_space<vmem>>, vector<1x256xf32>
    %452 = arith.mulf %450, %451 : vector<1x256xf32>
    %453 = arith.addf %443, %452 : vector<1x256xf32>
    %c25 = arith.constant 25 : index
    %454 = memref.load %arg7[%c25] : memref<99xf32, #tpu.memory_space<smem>>
    %455 = vector.extract_strided_slice %56 {offsets = [0, 1], sizes = [1, 255], strides = [1, 1]} : vector<1x256xf32> to vector<1x255xf32>
    %456 = vector.extract_strided_slice %56 {offsets = [0, 0], sizes = [1, 1], strides = [1, 1]} : vector<1x256xf32> to vector<1x1xf32>
    %457 = tpu.concatenate %455, %456 in 1 : vector<1x255xf32>, vector<1x1xf32> -> vector<1x256xf32>
    %458 = vector.broadcast %454 : f32 to vector<1x256xf32>
    %459 = arith.mulf %458, %457 : vector<1x256xf32>
    %c74 = arith.constant 74 : index
    %460 = memref.load %arg7[%c74] : memref<99xf32, #tpu.memory_space<smem>>
    %461 = vector.extract_strided_slice %58 {offsets = [0, 1], sizes = [1, 255], strides = [1, 1]} : vector<1x256xf32> to vector<1x255xf32>
    %462 = vector.extract_strided_slice %58 {offsets = [0, 0], sizes = [1, 1], strides = [1, 1]} : vector<1x256xf32> to vector<1x1xf32>
    %463 = tpu.concatenate %461, %462 in 1 : vector<1x255xf32>, vector<1x1xf32> -> vector<1x256xf32>
    %464 = vector.broadcast %460 : f32 to vector<1x256xf32>
    %465 = arith.mulf %464, %463 : vector<1x256xf32>
    %466 = arith.addf %459, %465 : vector<1x256xf32>
    %c25_79 = arith.constant 25 : index
    %c0_80 = arith.constant 0 : index
    %467 = vector.load %arg8[%c25_79, %c0_80] : memref<49x256xf32, #tpu.memory_space<vmem>>, vector<1x256xf32>
    %468 = arith.mulf %466, %467 : vector<1x256xf32>
    %469 = arith.addf %453, %468 : vector<1x256xf32>
    %c26 = arith.constant 26 : index
    %470 = memref.load %arg7[%c26] : memref<99xf32, #tpu.memory_space<smem>>
    %471 = vector.extract_strided_slice %56 {offsets = [0, 2], sizes = [1, 254], strides = [1, 1]} : vector<1x256xf32> to vector<1x254xf32>
    %472 = vector.extract_strided_slice %56 {offsets = [0, 0], sizes = [1, 2], strides = [1, 1]} : vector<1x256xf32> to vector<1x2xf32>
    %473 = tpu.concatenate %471, %472 in 1 : vector<1x254xf32>, vector<1x2xf32> -> vector<1x256xf32>
    %474 = vector.broadcast %470 : f32 to vector<1x256xf32>
    %475 = arith.mulf %474, %473 : vector<1x256xf32>
    %c75 = arith.constant 75 : index
    %476 = memref.load %arg7[%c75] : memref<99xf32, #tpu.memory_space<smem>>
    %477 = vector.extract_strided_slice %58 {offsets = [0, 2], sizes = [1, 254], strides = [1, 1]} : vector<1x256xf32> to vector<1x254xf32>
    %478 = vector.extract_strided_slice %58 {offsets = [0, 0], sizes = [1, 2], strides = [1, 1]} : vector<1x256xf32> to vector<1x2xf32>
    %479 = tpu.concatenate %477, %478 in 1 : vector<1x254xf32>, vector<1x2xf32> -> vector<1x256xf32>
    %480 = vector.broadcast %476 : f32 to vector<1x256xf32>
    %481 = arith.mulf %480, %479 : vector<1x256xf32>
    %482 = arith.addf %475, %481 : vector<1x256xf32>
    %c26_81 = arith.constant 26 : index
    %c0_82 = arith.constant 0 : index
    %483 = vector.load %arg8[%c26_81, %c0_82] : memref<49x256xf32, #tpu.memory_space<vmem>>, vector<1x256xf32>
    %484 = arith.mulf %482, %483 : vector<1x256xf32>
    %485 = arith.addf %469, %484 : vector<1x256xf32>
    %c27 = arith.constant 27 : index
    %486 = memref.load %arg7[%c27] : memref<99xf32, #tpu.memory_space<smem>>
    %487 = vector.extract_strided_slice %56 {offsets = [0, 3], sizes = [1, 253], strides = [1, 1]} : vector<1x256xf32> to vector<1x253xf32>
    %488 = vector.extract_strided_slice %56 {offsets = [0, 0], sizes = [1, 3], strides = [1, 1]} : vector<1x256xf32> to vector<1x3xf32>
    %489 = tpu.concatenate %487, %488 in 1 : vector<1x253xf32>, vector<1x3xf32> -> vector<1x256xf32>
    %490 = vector.broadcast %486 : f32 to vector<1x256xf32>
    %491 = arith.mulf %490, %489 : vector<1x256xf32>
    %c76 = arith.constant 76 : index
    %492 = memref.load %arg7[%c76] : memref<99xf32, #tpu.memory_space<smem>>
    %493 = vector.extract_strided_slice %58 {offsets = [0, 3], sizes = [1, 253], strides = [1, 1]} : vector<1x256xf32> to vector<1x253xf32>
    %494 = vector.extract_strided_slice %58 {offsets = [0, 0], sizes = [1, 3], strides = [1, 1]} : vector<1x256xf32> to vector<1x3xf32>
    %495 = tpu.concatenate %493, %494 in 1 : vector<1x253xf32>, vector<1x3xf32> -> vector<1x256xf32>
    %496 = vector.broadcast %492 : f32 to vector<1x256xf32>
    %497 = arith.mulf %496, %495 : vector<1x256xf32>
    %498 = arith.addf %491, %497 : vector<1x256xf32>
    %c27_83 = arith.constant 27 : index
    %c0_84 = arith.constant 0 : index
    %499 = vector.load %arg8[%c27_83, %c0_84] : memref<49x256xf32, #tpu.memory_space<vmem>>, vector<1x256xf32>
    %500 = arith.mulf %498, %499 : vector<1x256xf32>
    %501 = arith.addf %485, %500 : vector<1x256xf32>
    %c28 = arith.constant 28 : index
    %502 = memref.load %arg7[%c28] : memref<99xf32, #tpu.memory_space<smem>>
    %503 = vector.extract_strided_slice %56 {offsets = [0, 13], sizes = [1, 243], strides = [1, 1]} : vector<1x256xf32> to vector<1x243xf32>
    %504 = vector.extract_strided_slice %56 {offsets = [0, 0], sizes = [1, 13], strides = [1, 1]} : vector<1x256xf32> to vector<1x13xf32>
    %505 = tpu.concatenate %503, %504 in 1 : vector<1x243xf32>, vector<1x13xf32> -> vector<1x256xf32>
    %506 = vector.broadcast %502 : f32 to vector<1x256xf32>
    %507 = arith.mulf %506, %505 : vector<1x256xf32>
    %c77 = arith.constant 77 : index
    %508 = memref.load %arg7[%c77] : memref<99xf32, #tpu.memory_space<smem>>
    %509 = vector.extract_strided_slice %58 {offsets = [0, 13], sizes = [1, 243], strides = [1, 1]} : vector<1x256xf32> to vector<1x243xf32>
    %510 = vector.extract_strided_slice %58 {offsets = [0, 0], sizes = [1, 13], strides = [1, 1]} : vector<1x256xf32> to vector<1x13xf32>
    %511 = tpu.concatenate %509, %510 in 1 : vector<1x243xf32>, vector<1x13xf32> -> vector<1x256xf32>
    %512 = vector.broadcast %508 : f32 to vector<1x256xf32>
    %513 = arith.mulf %512, %511 : vector<1x256xf32>
    %514 = arith.addf %507, %513 : vector<1x256xf32>
    %c28_85 = arith.constant 28 : index
    %c0_86 = arith.constant 0 : index
    %515 = vector.load %arg8[%c28_85, %c0_86] : memref<49x256xf32, #tpu.memory_space<vmem>>, vector<1x256xf32>
    %516 = arith.mulf %514, %515 : vector<1x256xf32>
    %517 = arith.addf %501, %516 : vector<1x256xf32>
    %c29 = arith.constant 29 : index
    %518 = memref.load %arg7[%c29] : memref<99xf32, #tpu.memory_space<smem>>
    %519 = vector.extract_strided_slice %56 {offsets = [0, 14], sizes = [1, 242], strides = [1, 1]} : vector<1x256xf32> to vector<1x242xf32>
    %520 = vector.extract_strided_slice %56 {offsets = [0, 0], sizes = [1, 14], strides = [1, 1]} : vector<1x256xf32> to vector<1x14xf32>
    %521 = tpu.concatenate %519, %520 in 1 : vector<1x242xf32>, vector<1x14xf32> -> vector<1x256xf32>
    %522 = vector.broadcast %518 : f32 to vector<1x256xf32>
    %523 = arith.mulf %522, %521 : vector<1x256xf32>
    %c78 = arith.constant 78 : index
    %524 = memref.load %arg7[%c78] : memref<99xf32, #tpu.memory_space<smem>>
    %525 = vector.extract_strided_slice %58 {offsets = [0, 14], sizes = [1, 242], strides = [1, 1]} : vector<1x256xf32> to vector<1x242xf32>
    %526 = vector.extract_strided_slice %58 {offsets = [0, 0], sizes = [1, 14], strides = [1, 1]} : vector<1x256xf32> to vector<1x14xf32>
    %527 = tpu.concatenate %525, %526 in 1 : vector<1x242xf32>, vector<1x14xf32> -> vector<1x256xf32>
    %528 = vector.broadcast %524 : f32 to vector<1x256xf32>
    %529 = arith.mulf %528, %527 : vector<1x256xf32>
    %530 = arith.addf %523, %529 : vector<1x256xf32>
    %c29_87 = arith.constant 29 : index
    %c0_88 = arith.constant 0 : index
    %531 = vector.load %arg8[%c29_87, %c0_88] : memref<49x256xf32, #tpu.memory_space<vmem>>, vector<1x256xf32>
    %532 = arith.mulf %530, %531 : vector<1x256xf32>
    %533 = arith.addf %517, %532 : vector<1x256xf32>
    %c30 = arith.constant 30 : index
    %534 = memref.load %arg7[%c30] : memref<99xf32, #tpu.memory_space<smem>>
    %535 = vector.extract_strided_slice %56 {offsets = [0, 15], sizes = [1, 241], strides = [1, 1]} : vector<1x256xf32> to vector<1x241xf32>
    %536 = vector.extract_strided_slice %56 {offsets = [0, 0], sizes = [1, 15], strides = [1, 1]} : vector<1x256xf32> to vector<1x15xf32>
    %537 = tpu.concatenate %535, %536 in 1 : vector<1x241xf32>, vector<1x15xf32> -> vector<1x256xf32>
    %538 = vector.broadcast %534 : f32 to vector<1x256xf32>
    %539 = arith.mulf %538, %537 : vector<1x256xf32>
    %c79 = arith.constant 79 : index
    %540 = memref.load %arg7[%c79] : memref<99xf32, #tpu.memory_space<smem>>
    %541 = vector.extract_strided_slice %58 {offsets = [0, 15], sizes = [1, 241], strides = [1, 1]} : vector<1x256xf32> to vector<1x241xf32>
    %542 = vector.extract_strided_slice %58 {offsets = [0, 0], sizes = [1, 15], strides = [1, 1]} : vector<1x256xf32> to vector<1x15xf32>
    %543 = tpu.concatenate %541, %542 in 1 : vector<1x241xf32>, vector<1x15xf32> -> vector<1x256xf32>
    %544 = vector.broadcast %540 : f32 to vector<1x256xf32>
    %545 = arith.mulf %544, %543 : vector<1x256xf32>
    %546 = arith.addf %539, %545 : vector<1x256xf32>
    %c30_89 = arith.constant 30 : index
    %c0_90 = arith.constant 0 : index
    %547 = vector.load %arg8[%c30_89, %c0_90] : memref<49x256xf32, #tpu.memory_space<vmem>>, vector<1x256xf32>
    %548 = arith.mulf %546, %547 : vector<1x256xf32>
    %549 = arith.addf %533, %548 : vector<1x256xf32>
    %c31 = arith.constant 31 : index
    %550 = memref.load %arg7[%c31] : memref<99xf32, #tpu.memory_space<smem>>
    %551 = vector.extract_strided_slice %56 {offsets = [0, 16], sizes = [1, 240], strides = [1, 1]} : vector<1x256xf32> to vector<1x240xf32>
    %552 = vector.extract_strided_slice %56 {offsets = [0, 0], sizes = [1, 16], strides = [1, 1]} : vector<1x256xf32> to vector<1x16xf32>
    %553 = tpu.concatenate %551, %552 in 1 : vector<1x240xf32>, vector<1x16xf32> -> vector<1x256xf32>
    %554 = vector.broadcast %550 : f32 to vector<1x256xf32>
    %555 = arith.mulf %554, %553 : vector<1x256xf32>
    %c80 = arith.constant 80 : index
    %556 = memref.load %arg7[%c80] : memref<99xf32, #tpu.memory_space<smem>>
    %557 = vector.extract_strided_slice %58 {offsets = [0, 16], sizes = [1, 240], strides = [1, 1]} : vector<1x256xf32> to vector<1x240xf32>
    %558 = vector.extract_strided_slice %58 {offsets = [0, 0], sizes = [1, 16], strides = [1, 1]} : vector<1x256xf32> to vector<1x16xf32>
    %559 = tpu.concatenate %557, %558 in 1 : vector<1x240xf32>, vector<1x16xf32> -> vector<1x256xf32>
    %560 = vector.broadcast %556 : f32 to vector<1x256xf32>
    %561 = arith.mulf %560, %559 : vector<1x256xf32>
    %562 = arith.addf %555, %561 : vector<1x256xf32>
    %c31_91 = arith.constant 31 : index
    %c0_92 = arith.constant 0 : index
    %563 = vector.load %arg8[%c31_91, %c0_92] : memref<49x256xf32, #tpu.memory_space<vmem>>, vector<1x256xf32>
    %564 = arith.mulf %562, %563 : vector<1x256xf32>
    %565 = arith.addf %549, %564 : vector<1x256xf32>
    %c32 = arith.constant 32 : index
    %566 = memref.load %arg7[%c32] : memref<99xf32, #tpu.memory_space<smem>>
    %567 = vector.extract_strided_slice %56 {offsets = [0, 17], sizes = [1, 239], strides = [1, 1]} : vector<1x256xf32> to vector<1x239xf32>
    %568 = vector.extract_strided_slice %56 {offsets = [0, 0], sizes = [1, 17], strides = [1, 1]} : vector<1x256xf32> to vector<1x17xf32>
    %569 = tpu.concatenate %567, %568 in 1 : vector<1x239xf32>, vector<1x17xf32> -> vector<1x256xf32>
    %570 = vector.broadcast %566 : f32 to vector<1x256xf32>
    %571 = arith.mulf %570, %569 : vector<1x256xf32>
    %c81 = arith.constant 81 : index
    %572 = memref.load %arg7[%c81] : memref<99xf32, #tpu.memory_space<smem>>
    %573 = vector.extract_strided_slice %58 {offsets = [0, 17], sizes = [1, 239], strides = [1, 1]} : vector<1x256xf32> to vector<1x239xf32>
    %574 = vector.extract_strided_slice %58 {offsets = [0, 0], sizes = [1, 17], strides = [1, 1]} : vector<1x256xf32> to vector<1x17xf32>
    %575 = tpu.concatenate %573, %574 in 1 : vector<1x239xf32>, vector<1x17xf32> -> vector<1x256xf32>
    %576 = vector.broadcast %572 : f32 to vector<1x256xf32>
    %577 = arith.mulf %576, %575 : vector<1x256xf32>
    %578 = arith.addf %571, %577 : vector<1x256xf32>
    %c32_93 = arith.constant 32 : index
    %c0_94 = arith.constant 0 : index
    %579 = vector.load %arg8[%c32_93, %c0_94] : memref<49x256xf32, #tpu.memory_space<vmem>>, vector<1x256xf32>
    %580 = arith.mulf %578, %579 : vector<1x256xf32>
    %581 = arith.addf %565, %580 : vector<1x256xf32>
    %c33 = arith.constant 33 : index
    %582 = memref.load %arg7[%c33] : memref<99xf32, #tpu.memory_space<smem>>
    %583 = vector.extract_strided_slice %56 {offsets = [0, 18], sizes = [1, 238], strides = [1, 1]} : vector<1x256xf32> to vector<1x238xf32>
    %584 = vector.extract_strided_slice %56 {offsets = [0, 0], sizes = [1, 18], strides = [1, 1]} : vector<1x256xf32> to vector<1x18xf32>
    %585 = tpu.concatenate %583, %584 in 1 : vector<1x238xf32>, vector<1x18xf32> -> vector<1x256xf32>
    %586 = vector.broadcast %582 : f32 to vector<1x256xf32>
    %587 = arith.mulf %586, %585 : vector<1x256xf32>
    %c82 = arith.constant 82 : index
    %588 = memref.load %arg7[%c82] : memref<99xf32, #tpu.memory_space<smem>>
    %589 = vector.extract_strided_slice %58 {offsets = [0, 18], sizes = [1, 238], strides = [1, 1]} : vector<1x256xf32> to vector<1x238xf32>
    %590 = vector.extract_strided_slice %58 {offsets = [0, 0], sizes = [1, 18], strides = [1, 1]} : vector<1x256xf32> to vector<1x18xf32>
    %591 = tpu.concatenate %589, %590 in 1 : vector<1x238xf32>, vector<1x18xf32> -> vector<1x256xf32>
    %592 = vector.broadcast %588 : f32 to vector<1x256xf32>
    %593 = arith.mulf %592, %591 : vector<1x256xf32>
    %594 = arith.addf %587, %593 : vector<1x256xf32>
    %c33_95 = arith.constant 33 : index
    %c0_96 = arith.constant 0 : index
    %595 = vector.load %arg8[%c33_95, %c0_96] : memref<49x256xf32, #tpu.memory_space<vmem>>, vector<1x256xf32>
    %596 = arith.mulf %594, %595 : vector<1x256xf32>
    %597 = arith.addf %581, %596 : vector<1x256xf32>
    %c34 = arith.constant 34 : index
    %598 = memref.load %arg7[%c34] : memref<99xf32, #tpu.memory_space<smem>>
    %599 = vector.extract_strided_slice %56 {offsets = [0, 19], sizes = [1, 237], strides = [1, 1]} : vector<1x256xf32> to vector<1x237xf32>
    %600 = vector.extract_strided_slice %56 {offsets = [0, 0], sizes = [1, 19], strides = [1, 1]} : vector<1x256xf32> to vector<1x19xf32>
    %601 = tpu.concatenate %599, %600 in 1 : vector<1x237xf32>, vector<1x19xf32> -> vector<1x256xf32>
    %602 = vector.broadcast %598 : f32 to vector<1x256xf32>
    %603 = arith.mulf %602, %601 : vector<1x256xf32>
    %c83 = arith.constant 83 : index
    %604 = memref.load %arg7[%c83] : memref<99xf32, #tpu.memory_space<smem>>
    %605 = vector.extract_strided_slice %58 {offsets = [0, 19], sizes = [1, 237], strides = [1, 1]} : vector<1x256xf32> to vector<1x237xf32>
    %606 = vector.extract_strided_slice %58 {offsets = [0, 0], sizes = [1, 19], strides = [1, 1]} : vector<1x256xf32> to vector<1x19xf32>
    %607 = tpu.concatenate %605, %606 in 1 : vector<1x237xf32>, vector<1x19xf32> -> vector<1x256xf32>
    %608 = vector.broadcast %604 : f32 to vector<1x256xf32>
    %609 = arith.mulf %608, %607 : vector<1x256xf32>
    %610 = arith.addf %603, %609 : vector<1x256xf32>
    %c34_97 = arith.constant 34 : index
    %c0_98 = arith.constant 0 : index
    %611 = vector.load %arg8[%c34_97, %c0_98] : memref<49x256xf32, #tpu.memory_space<vmem>>, vector<1x256xf32>
    %612 = arith.mulf %610, %611 : vector<1x256xf32>
    %613 = arith.addf %597, %612 : vector<1x256xf32>
    %c35 = arith.constant 35 : index
    %614 = memref.load %arg7[%c35] : memref<99xf32, #tpu.memory_space<smem>>
    %615 = vector.extract_strided_slice %56 {offsets = [0, 29], sizes = [1, 227], strides = [1, 1]} : vector<1x256xf32> to vector<1x227xf32>
    %616 = vector.extract_strided_slice %56 {offsets = [0, 0], sizes = [1, 29], strides = [1, 1]} : vector<1x256xf32> to vector<1x29xf32>
    %617 = tpu.concatenate %615, %616 in 1 : vector<1x227xf32>, vector<1x29xf32> -> vector<1x256xf32>
    %618 = vector.broadcast %614 : f32 to vector<1x256xf32>
    %619 = arith.mulf %618, %617 : vector<1x256xf32>
    %c84 = arith.constant 84 : index
    %620 = memref.load %arg7[%c84] : memref<99xf32, #tpu.memory_space<smem>>
    %621 = vector.extract_strided_slice %58 {offsets = [0, 29], sizes = [1, 227], strides = [1, 1]} : vector<1x256xf32> to vector<1x227xf32>
    %622 = vector.extract_strided_slice %58 {offsets = [0, 0], sizes = [1, 29], strides = [1, 1]} : vector<1x256xf32> to vector<1x29xf32>
    %623 = tpu.concatenate %621, %622 in 1 : vector<1x227xf32>, vector<1x29xf32> -> vector<1x256xf32>
    %624 = vector.broadcast %620 : f32 to vector<1x256xf32>
    %625 = arith.mulf %624, %623 : vector<1x256xf32>
    %626 = arith.addf %619, %625 : vector<1x256xf32>
    %c35_99 = arith.constant 35 : index
    %c0_100 = arith.constant 0 : index
    %627 = vector.load %arg8[%c35_99, %c0_100] : memref<49x256xf32, #tpu.memory_space<vmem>>, vector<1x256xf32>
    %628 = arith.mulf %626, %627 : vector<1x256xf32>
    %629 = arith.addf %613, %628 : vector<1x256xf32>
    %c36 = arith.constant 36 : index
    %630 = memref.load %arg7[%c36] : memref<99xf32, #tpu.memory_space<smem>>
    %631 = vector.extract_strided_slice %56 {offsets = [0, 30], sizes = [1, 226], strides = [1, 1]} : vector<1x256xf32> to vector<1x226xf32>
    %632 = vector.extract_strided_slice %56 {offsets = [0, 0], sizes = [1, 30], strides = [1, 1]} : vector<1x256xf32> to vector<1x30xf32>
    %633 = tpu.concatenate %631, %632 in 1 : vector<1x226xf32>, vector<1x30xf32> -> vector<1x256xf32>
    %634 = vector.broadcast %630 : f32 to vector<1x256xf32>
    %635 = arith.mulf %634, %633 : vector<1x256xf32>
    %c85 = arith.constant 85 : index
    %636 = memref.load %arg7[%c85] : memref<99xf32, #tpu.memory_space<smem>>
    %637 = vector.extract_strided_slice %58 {offsets = [0, 30], sizes = [1, 226], strides = [1, 1]} : vector<1x256xf32> to vector<1x226xf32>
    %638 = vector.extract_strided_slice %58 {offsets = [0, 0], sizes = [1, 30], strides = [1, 1]} : vector<1x256xf32> to vector<1x30xf32>
    %639 = tpu.concatenate %637, %638 in 1 : vector<1x226xf32>, vector<1x30xf32> -> vector<1x256xf32>
    %640 = vector.broadcast %636 : f32 to vector<1x256xf32>
    %641 = arith.mulf %640, %639 : vector<1x256xf32>
    %642 = arith.addf %635, %641 : vector<1x256xf32>
    %c36_101 = arith.constant 36 : index
    %c0_102 = arith.constant 0 : index
    %643 = vector.load %arg8[%c36_101, %c0_102] : memref<49x256xf32, #tpu.memory_space<vmem>>, vector<1x256xf32>
    %644 = arith.mulf %642, %643 : vector<1x256xf32>
    %645 = arith.addf %629, %644 : vector<1x256xf32>
    %c37 = arith.constant 37 : index
    %646 = memref.load %arg7[%c37] : memref<99xf32, #tpu.memory_space<smem>>
    %647 = vector.extract_strided_slice %56 {offsets = [0, 31], sizes = [1, 225], strides = [1, 1]} : vector<1x256xf32> to vector<1x225xf32>
    %648 = vector.extract_strided_slice %56 {offsets = [0, 0], sizes = [1, 31], strides = [1, 1]} : vector<1x256xf32> to vector<1x31xf32>
    %649 = tpu.concatenate %647, %648 in 1 : vector<1x225xf32>, vector<1x31xf32> -> vector<1x256xf32>
    %650 = vector.broadcast %646 : f32 to vector<1x256xf32>
    %651 = arith.mulf %650, %649 : vector<1x256xf32>
    %c86 = arith.constant 86 : index
    %652 = memref.load %arg7[%c86] : memref<99xf32, #tpu.memory_space<smem>>
    %653 = vector.extract_strided_slice %58 {offsets = [0, 31], sizes = [1, 225], strides = [1, 1]} : vector<1x256xf32> to vector<1x225xf32>
    %654 = vector.extract_strided_slice %58 {offsets = [0, 0], sizes = [1, 31], strides = [1, 1]} : vector<1x256xf32> to vector<1x31xf32>
    %655 = tpu.concatenate %653, %654 in 1 : vector<1x225xf32>, vector<1x31xf32> -> vector<1x256xf32>
    %656 = vector.broadcast %652 : f32 to vector<1x256xf32>
    %657 = arith.mulf %656, %655 : vector<1x256xf32>
    %658 = arith.addf %651, %657 : vector<1x256xf32>
    %c37_103 = arith.constant 37 : index
    %c0_104 = arith.constant 0 : index
    %659 = vector.load %arg8[%c37_103, %c0_104] : memref<49x256xf32, #tpu.memory_space<vmem>>, vector<1x256xf32>
    %660 = arith.mulf %658, %659 : vector<1x256xf32>
    %661 = arith.addf %645, %660 : vector<1x256xf32>
    %c38 = arith.constant 38 : index
    %662 = memref.load %arg7[%c38] : memref<99xf32, #tpu.memory_space<smem>>
    %663 = vector.extract_strided_slice %56 {offsets = [0, 32], sizes = [1, 224], strides = [1, 1]} : vector<1x256xf32> to vector<1x224xf32>
    %664 = vector.extract_strided_slice %56 {offsets = [0, 0], sizes = [1, 32], strides = [1, 1]} : vector<1x256xf32> to vector<1x32xf32>
    %665 = tpu.concatenate %663, %664 in 1 : vector<1x224xf32>, vector<1x32xf32> -> vector<1x256xf32>
    %666 = vector.broadcast %662 : f32 to vector<1x256xf32>
    %667 = arith.mulf %666, %665 : vector<1x256xf32>
    %c87 = arith.constant 87 : index
    %668 = memref.load %arg7[%c87] : memref<99xf32, #tpu.memory_space<smem>>
    %669 = vector.extract_strided_slice %58 {offsets = [0, 32], sizes = [1, 224], strides = [1, 1]} : vector<1x256xf32> to vector<1x224xf32>
    %670 = vector.extract_strided_slice %58 {offsets = [0, 0], sizes = [1, 32], strides = [1, 1]} : vector<1x256xf32> to vector<1x32xf32>
    %671 = tpu.concatenate %669, %670 in 1 : vector<1x224xf32>, vector<1x32xf32> -> vector<1x256xf32>
    %672 = vector.broadcast %668 : f32 to vector<1x256xf32>
    %673 = arith.mulf %672, %671 : vector<1x256xf32>
    %674 = arith.addf %667, %673 : vector<1x256xf32>
    %c38_105 = arith.constant 38 : index
    %c0_106 = arith.constant 0 : index
    %675 = vector.load %arg8[%c38_105, %c0_106] : memref<49x256xf32, #tpu.memory_space<vmem>>, vector<1x256xf32>
    %676 = arith.mulf %674, %675 : vector<1x256xf32>
    %677 = arith.addf %661, %676 : vector<1x256xf32>
    %c39 = arith.constant 39 : index
    %678 = memref.load %arg7[%c39] : memref<99xf32, #tpu.memory_space<smem>>
    %679 = vector.extract_strided_slice %56 {offsets = [0, 33], sizes = [1, 223], strides = [1, 1]} : vector<1x256xf32> to vector<1x223xf32>
    %680 = vector.extract_strided_slice %56 {offsets = [0, 0], sizes = [1, 33], strides = [1, 1]} : vector<1x256xf32> to vector<1x33xf32>
    %681 = tpu.concatenate %679, %680 in 1 : vector<1x223xf32>, vector<1x33xf32> -> vector<1x256xf32>
    %682 = vector.broadcast %678 : f32 to vector<1x256xf32>
    %683 = arith.mulf %682, %681 : vector<1x256xf32>
    %c88 = arith.constant 88 : index
    %684 = memref.load %arg7[%c88] : memref<99xf32, #tpu.memory_space<smem>>
    %685 = vector.extract_strided_slice %58 {offsets = [0, 33], sizes = [1, 223], strides = [1, 1]} : vector<1x256xf32> to vector<1x223xf32>
    %686 = vector.extract_strided_slice %58 {offsets = [0, 0], sizes = [1, 33], strides = [1, 1]} : vector<1x256xf32> to vector<1x33xf32>
    %687 = tpu.concatenate %685, %686 in 1 : vector<1x223xf32>, vector<1x33xf32> -> vector<1x256xf32>
    %688 = vector.broadcast %684 : f32 to vector<1x256xf32>
    %689 = arith.mulf %688, %687 : vector<1x256xf32>
    %690 = arith.addf %683, %689 : vector<1x256xf32>
    %c39_107 = arith.constant 39 : index
    %c0_108 = arith.constant 0 : index
    %691 = vector.load %arg8[%c39_107, %c0_108] : memref<49x256xf32, #tpu.memory_space<vmem>>, vector<1x256xf32>
    %692 = arith.mulf %690, %691 : vector<1x256xf32>
    %693 = arith.addf %677, %692 : vector<1x256xf32>
    %c40 = arith.constant 40 : index
    %694 = memref.load %arg7[%c40] : memref<99xf32, #tpu.memory_space<smem>>
    %695 = vector.extract_strided_slice %56 {offsets = [0, 34], sizes = [1, 222], strides = [1, 1]} : vector<1x256xf32> to vector<1x222xf32>
    %696 = vector.extract_strided_slice %56 {offsets = [0, 0], sizes = [1, 34], strides = [1, 1]} : vector<1x256xf32> to vector<1x34xf32>
    %697 = tpu.concatenate %695, %696 in 1 : vector<1x222xf32>, vector<1x34xf32> -> vector<1x256xf32>
    %698 = vector.broadcast %694 : f32 to vector<1x256xf32>
    %699 = arith.mulf %698, %697 : vector<1x256xf32>
    %c89 = arith.constant 89 : index
    %700 = memref.load %arg7[%c89] : memref<99xf32, #tpu.memory_space<smem>>
    %701 = vector.extract_strided_slice %58 {offsets = [0, 34], sizes = [1, 222], strides = [1, 1]} : vector<1x256xf32> to vector<1x222xf32>
    %702 = vector.extract_strided_slice %58 {offsets = [0, 0], sizes = [1, 34], strides = [1, 1]} : vector<1x256xf32> to vector<1x34xf32>
    %703 = tpu.concatenate %701, %702 in 1 : vector<1x222xf32>, vector<1x34xf32> -> vector<1x256xf32>
    %704 = vector.broadcast %700 : f32 to vector<1x256xf32>
    %705 = arith.mulf %704, %703 : vector<1x256xf32>
    %706 = arith.addf %699, %705 : vector<1x256xf32>
    %c40_109 = arith.constant 40 : index
    %c0_110 = arith.constant 0 : index
    %707 = vector.load %arg8[%c40_109, %c0_110] : memref<49x256xf32, #tpu.memory_space<vmem>>, vector<1x256xf32>
    %708 = arith.mulf %706, %707 : vector<1x256xf32>
    %709 = arith.addf %693, %708 : vector<1x256xf32>
    %c41 = arith.constant 41 : index
    %710 = memref.load %arg7[%c41] : memref<99xf32, #tpu.memory_space<smem>>
    %711 = vector.extract_strided_slice %56 {offsets = [0, 35], sizes = [1, 221], strides = [1, 1]} : vector<1x256xf32> to vector<1x221xf32>
    %712 = vector.extract_strided_slice %56 {offsets = [0, 0], sizes = [1, 35], strides = [1, 1]} : vector<1x256xf32> to vector<1x35xf32>
    %713 = tpu.concatenate %711, %712 in 1 : vector<1x221xf32>, vector<1x35xf32> -> vector<1x256xf32>
    %714 = vector.broadcast %710 : f32 to vector<1x256xf32>
    %715 = arith.mulf %714, %713 : vector<1x256xf32>
    %c90 = arith.constant 90 : index
    %716 = memref.load %arg7[%c90] : memref<99xf32, #tpu.memory_space<smem>>
    %717 = vector.extract_strided_slice %58 {offsets = [0, 35], sizes = [1, 221], strides = [1, 1]} : vector<1x256xf32> to vector<1x221xf32>
    %718 = vector.extract_strided_slice %58 {offsets = [0, 0], sizes = [1, 35], strides = [1, 1]} : vector<1x256xf32> to vector<1x35xf32>
    %719 = tpu.concatenate %717, %718 in 1 : vector<1x221xf32>, vector<1x35xf32> -> vector<1x256xf32>
    %720 = vector.broadcast %716 : f32 to vector<1x256xf32>
    %721 = arith.mulf %720, %719 : vector<1x256xf32>
    %722 = arith.addf %715, %721 : vector<1x256xf32>
    %c41_111 = arith.constant 41 : index
    %c0_112 = arith.constant 0 : index
    %723 = vector.load %arg8[%c41_111, %c0_112] : memref<49x256xf32, #tpu.memory_space<vmem>>, vector<1x256xf32>
    %724 = arith.mulf %722, %723 : vector<1x256xf32>
    %725 = arith.addf %709, %724 : vector<1x256xf32>
    %c42 = arith.constant 42 : index
    %726 = memref.load %arg7[%c42] : memref<99xf32, #tpu.memory_space<smem>>
    %727 = vector.extract_strided_slice %56 {offsets = [0, 45], sizes = [1, 211], strides = [1, 1]} : vector<1x256xf32> to vector<1x211xf32>
    %728 = vector.extract_strided_slice %56 {offsets = [0, 0], sizes = [1, 45], strides = [1, 1]} : vector<1x256xf32> to vector<1x45xf32>
    %729 = tpu.concatenate %727, %728 in 1 : vector<1x211xf32>, vector<1x45xf32> -> vector<1x256xf32>
    %730 = vector.broadcast %726 : f32 to vector<1x256xf32>
    %731 = arith.mulf %730, %729 : vector<1x256xf32>
    %c91 = arith.constant 91 : index
    %732 = memref.load %arg7[%c91] : memref<99xf32, #tpu.memory_space<smem>>
    %733 = vector.extract_strided_slice %58 {offsets = [0, 45], sizes = [1, 211], strides = [1, 1]} : vector<1x256xf32> to vector<1x211xf32>
    %734 = vector.extract_strided_slice %58 {offsets = [0, 0], sizes = [1, 45], strides = [1, 1]} : vector<1x256xf32> to vector<1x45xf32>
    %735 = tpu.concatenate %733, %734 in 1 : vector<1x211xf32>, vector<1x45xf32> -> vector<1x256xf32>
    %736 = vector.broadcast %732 : f32 to vector<1x256xf32>
    %737 = arith.mulf %736, %735 : vector<1x256xf32>
    %738 = arith.addf %731, %737 : vector<1x256xf32>
    %c42_113 = arith.constant 42 : index
    %c0_114 = arith.constant 0 : index
    %739 = vector.load %arg8[%c42_113, %c0_114] : memref<49x256xf32, #tpu.memory_space<vmem>>, vector<1x256xf32>
    %740 = arith.mulf %738, %739 : vector<1x256xf32>
    %741 = arith.addf %725, %740 : vector<1x256xf32>
    %c43 = arith.constant 43 : index
    %742 = memref.load %arg7[%c43] : memref<99xf32, #tpu.memory_space<smem>>
    %743 = vector.extract_strided_slice %56 {offsets = [0, 46], sizes = [1, 210], strides = [1, 1]} : vector<1x256xf32> to vector<1x210xf32>
    %744 = vector.extract_strided_slice %56 {offsets = [0, 0], sizes = [1, 46], strides = [1, 1]} : vector<1x256xf32> to vector<1x46xf32>
    %745 = tpu.concatenate %743, %744 in 1 : vector<1x210xf32>, vector<1x46xf32> -> vector<1x256xf32>
    %746 = vector.broadcast %742 : f32 to vector<1x256xf32>
    %747 = arith.mulf %746, %745 : vector<1x256xf32>
    %c92 = arith.constant 92 : index
    %748 = memref.load %arg7[%c92] : memref<99xf32, #tpu.memory_space<smem>>
    %749 = vector.extract_strided_slice %58 {offsets = [0, 46], sizes = [1, 210], strides = [1, 1]} : vector<1x256xf32> to vector<1x210xf32>
    %750 = vector.extract_strided_slice %58 {offsets = [0, 0], sizes = [1, 46], strides = [1, 1]} : vector<1x256xf32> to vector<1x46xf32>
    %751 = tpu.concatenate %749, %750 in 1 : vector<1x210xf32>, vector<1x46xf32> -> vector<1x256xf32>
    %752 = vector.broadcast %748 : f32 to vector<1x256xf32>
    %753 = arith.mulf %752, %751 : vector<1x256xf32>
    %754 = arith.addf %747, %753 : vector<1x256xf32>
    %c43_115 = arith.constant 43 : index
    %c0_116 = arith.constant 0 : index
    %755 = vector.load %arg8[%c43_115, %c0_116] : memref<49x256xf32, #tpu.memory_space<vmem>>, vector<1x256xf32>
    %756 = arith.mulf %754, %755 : vector<1x256xf32>
    %757 = arith.addf %741, %756 : vector<1x256xf32>
    %c44 = arith.constant 44 : index
    %758 = memref.load %arg7[%c44] : memref<99xf32, #tpu.memory_space<smem>>
    %759 = vector.extract_strided_slice %56 {offsets = [0, 47], sizes = [1, 209], strides = [1, 1]} : vector<1x256xf32> to vector<1x209xf32>
    %760 = vector.extract_strided_slice %56 {offsets = [0, 0], sizes = [1, 47], strides = [1, 1]} : vector<1x256xf32> to vector<1x47xf32>
    %761 = tpu.concatenate %759, %760 in 1 : vector<1x209xf32>, vector<1x47xf32> -> vector<1x256xf32>
    %762 = vector.broadcast %758 : f32 to vector<1x256xf32>
    %763 = arith.mulf %762, %761 : vector<1x256xf32>
    %c93 = arith.constant 93 : index
    %764 = memref.load %arg7[%c93] : memref<99xf32, #tpu.memory_space<smem>>
    %765 = vector.extract_strided_slice %58 {offsets = [0, 47], sizes = [1, 209], strides = [1, 1]} : vector<1x256xf32> to vector<1x209xf32>
    %766 = vector.extract_strided_slice %58 {offsets = [0, 0], sizes = [1, 47], strides = [1, 1]} : vector<1x256xf32> to vector<1x47xf32>
    %767 = tpu.concatenate %765, %766 in 1 : vector<1x209xf32>, vector<1x47xf32> -> vector<1x256xf32>
    %768 = vector.broadcast %764 : f32 to vector<1x256xf32>
    %769 = arith.mulf %768, %767 : vector<1x256xf32>
    %770 = arith.addf %763, %769 : vector<1x256xf32>
    %c44_117 = arith.constant 44 : index
    %c0_118 = arith.constant 0 : index
    %771 = vector.load %arg8[%c44_117, %c0_118] : memref<49x256xf32, #tpu.memory_space<vmem>>, vector<1x256xf32>
    %772 = arith.mulf %770, %771 : vector<1x256xf32>
    %773 = arith.addf %757, %772 : vector<1x256xf32>
    %c45 = arith.constant 45 : index
    %774 = memref.load %arg7[%c45] : memref<99xf32, #tpu.memory_space<smem>>
    %775 = vector.extract_strided_slice %56 {offsets = [0, 48], sizes = [1, 208], strides = [1, 1]} : vector<1x256xf32> to vector<1x208xf32>
    %776 = vector.extract_strided_slice %56 {offsets = [0, 0], sizes = [1, 48], strides = [1, 1]} : vector<1x256xf32> to vector<1x48xf32>
    %777 = tpu.concatenate %775, %776 in 1 : vector<1x208xf32>, vector<1x48xf32> -> vector<1x256xf32>
    %778 = vector.broadcast %774 : f32 to vector<1x256xf32>
    %779 = arith.mulf %778, %777 : vector<1x256xf32>
    %c94 = arith.constant 94 : index
    %780 = memref.load %arg7[%c94] : memref<99xf32, #tpu.memory_space<smem>>
    %781 = vector.extract_strided_slice %58 {offsets = [0, 48], sizes = [1, 208], strides = [1, 1]} : vector<1x256xf32> to vector<1x208xf32>
    %782 = vector.extract_strided_slice %58 {offsets = [0, 0], sizes = [1, 48], strides = [1, 1]} : vector<1x256xf32> to vector<1x48xf32>
    %783 = tpu.concatenate %781, %782 in 1 : vector<1x208xf32>, vector<1x48xf32> -> vector<1x256xf32>
    %784 = vector.broadcast %780 : f32 to vector<1x256xf32>
    %785 = arith.mulf %784, %783 : vector<1x256xf32>
    %786 = arith.addf %779, %785 : vector<1x256xf32>
    %c45_119 = arith.constant 45 : index
    %c0_120 = arith.constant 0 : index
    %787 = vector.load %arg8[%c45_119, %c0_120] : memref<49x256xf32, #tpu.memory_space<vmem>>, vector<1x256xf32>
    %788 = arith.mulf %786, %787 : vector<1x256xf32>
    %789 = arith.addf %773, %788 : vector<1x256xf32>
    %c46 = arith.constant 46 : index
    %790 = memref.load %arg7[%c46] : memref<99xf32, #tpu.memory_space<smem>>
    %791 = vector.extract_strided_slice %56 {offsets = [0, 49], sizes = [1, 207], strides = [1, 1]} : vector<1x256xf32> to vector<1x207xf32>
    %792 = vector.extract_strided_slice %56 {offsets = [0, 0], sizes = [1, 49], strides = [1, 1]} : vector<1x256xf32> to vector<1x49xf32>
    %793 = tpu.concatenate %791, %792 in 1 : vector<1x207xf32>, vector<1x49xf32> -> vector<1x256xf32>
    %794 = vector.broadcast %790 : f32 to vector<1x256xf32>
    %795 = arith.mulf %794, %793 : vector<1x256xf32>
    %c95 = arith.constant 95 : index
    %796 = memref.load %arg7[%c95] : memref<99xf32, #tpu.memory_space<smem>>
    %797 = vector.extract_strided_slice %58 {offsets = [0, 49], sizes = [1, 207], strides = [1, 1]} : vector<1x256xf32> to vector<1x207xf32>
    %798 = vector.extract_strided_slice %58 {offsets = [0, 0], sizes = [1, 49], strides = [1, 1]} : vector<1x256xf32> to vector<1x49xf32>
    %799 = tpu.concatenate %797, %798 in 1 : vector<1x207xf32>, vector<1x49xf32> -> vector<1x256xf32>
    %800 = vector.broadcast %796 : f32 to vector<1x256xf32>
    %801 = arith.mulf %800, %799 : vector<1x256xf32>
    %802 = arith.addf %795, %801 : vector<1x256xf32>
    %c46_121 = arith.constant 46 : index
    %c0_122 = arith.constant 0 : index
    %803 = vector.load %arg8[%c46_121, %c0_122] : memref<49x256xf32, #tpu.memory_space<vmem>>, vector<1x256xf32>
    %804 = arith.mulf %802, %803 : vector<1x256xf32>
    %805 = arith.addf %789, %804 : vector<1x256xf32>
    %c47 = arith.constant 47 : index
    %806 = memref.load %arg7[%c47] : memref<99xf32, #tpu.memory_space<smem>>
    %807 = vector.extract_strided_slice %56 {offsets = [0, 50], sizes = [1, 206], strides = [1, 1]} : vector<1x256xf32> to vector<1x206xf32>
    %808 = vector.extract_strided_slice %56 {offsets = [0, 0], sizes = [1, 50], strides = [1, 1]} : vector<1x256xf32> to vector<1x50xf32>
    %809 = tpu.concatenate %807, %808 in 1 : vector<1x206xf32>, vector<1x50xf32> -> vector<1x256xf32>
    %810 = vector.broadcast %806 : f32 to vector<1x256xf32>
    %811 = arith.mulf %810, %809 : vector<1x256xf32>
    %c96 = arith.constant 96 : index
    %812 = memref.load %arg7[%c96] : memref<99xf32, #tpu.memory_space<smem>>
    %813 = vector.extract_strided_slice %58 {offsets = [0, 50], sizes = [1, 206], strides = [1, 1]} : vector<1x256xf32> to vector<1x206xf32>
    %814 = vector.extract_strided_slice %58 {offsets = [0, 0], sizes = [1, 50], strides = [1, 1]} : vector<1x256xf32> to vector<1x50xf32>
    %815 = tpu.concatenate %813, %814 in 1 : vector<1x206xf32>, vector<1x50xf32> -> vector<1x256xf32>
    %816 = vector.broadcast %812 : f32 to vector<1x256xf32>
    %817 = arith.mulf %816, %815 : vector<1x256xf32>
    %818 = arith.addf %811, %817 : vector<1x256xf32>
    %c47_123 = arith.constant 47 : index
    %c0_124 = arith.constant 0 : index
    %819 = vector.load %arg8[%c47_123, %c0_124] : memref<49x256xf32, #tpu.memory_space<vmem>>, vector<1x256xf32>
    %820 = arith.mulf %818, %819 : vector<1x256xf32>
    %821 = arith.addf %805, %820 : vector<1x256xf32>
    %c48 = arith.constant 48 : index
    %822 = memref.load %arg7[%c48] : memref<99xf32, #tpu.memory_space<smem>>
    %823 = vector.extract_strided_slice %56 {offsets = [0, 51], sizes = [1, 205], strides = [1, 1]} : vector<1x256xf32> to vector<1x205xf32>
    %824 = vector.extract_strided_slice %56 {offsets = [0, 0], sizes = [1, 51], strides = [1, 1]} : vector<1x256xf32> to vector<1x51xf32>
    %825 = tpu.concatenate %823, %824 in 1 : vector<1x205xf32>, vector<1x51xf32> -> vector<1x256xf32>
    %826 = vector.broadcast %822 : f32 to vector<1x256xf32>
    %827 = arith.mulf %826, %825 : vector<1x256xf32>
    %c97 = arith.constant 97 : index
    %828 = memref.load %arg7[%c97] : memref<99xf32, #tpu.memory_space<smem>>
    %829 = vector.extract_strided_slice %58 {offsets = [0, 51], sizes = [1, 205], strides = [1, 1]} : vector<1x256xf32> to vector<1x205xf32>
    %830 = vector.extract_strided_slice %58 {offsets = [0, 0], sizes = [1, 51], strides = [1, 1]} : vector<1x256xf32> to vector<1x51xf32>
    %831 = tpu.concatenate %829, %830 in 1 : vector<1x205xf32>, vector<1x51xf32> -> vector<1x256xf32>
    %832 = vector.broadcast %828 : f32 to vector<1x256xf32>
    %833 = arith.mulf %832, %831 : vector<1x256xf32>
    %834 = arith.addf %827, %833 : vector<1x256xf32>
    %c48_125 = arith.constant 48 : index
    %c0_126 = arith.constant 0 : index
    %835 = vector.load %arg8[%c48_125, %c0_126] : memref<49x256xf32, #tpu.memory_space<vmem>>, vector<1x256xf32>
    %836 = arith.mulf %834, %835 : vector<1x256xf32>
    %837 = arith.addf %821, %836 : vector<1x256xf32>
    %c98 = arith.constant 98 : index
    %838 = memref.load %arg7[%c98] : memref<99xf32, #tpu.memory_space<smem>>
    %839 = vector.broadcast %838 : f32 to vector<1x256xf32>
    %840 = arith.addf %837, %839 : vector<1x256xf32>
    %841 = arith.negf %840 : vector<1x256xf32>
    %842 = math.exp %841 : vector<1x256xf32>
    %cst_127 = arith.constant 1.000000e+00 : f32
    %843 = vector.broadcast %cst_127 : f32 to vector<1x256xf32>
    %844 = arith.addf %843, %842 : vector<1x256xf32>
    %845 = arith.divf %843, %844 : vector<1x256xf32>
    %846 = arith.mulf %840, %845 : vector<1x256xf32>
    %847 = arith.negf %846 : vector<1x256xf32>
    %848 = math.exp %847 : vector<1x256xf32>
    %cst_128 = arith.constant 1.000000e+00 : f32
    %849 = vector.broadcast %cst_128 : f32 to vector<1x256xf32>
    %850 = arith.addf %849, %848 : vector<1x256xf32>
    %851 = arith.divf %849, %850 : vector<1x256xf32>
    %852 = vector.broadcast %52 : vector<4x1xf32> to vector<4x256xf32>
    %853 = vector.broadcast %851 : vector<1x256xf32> to vector<4x256xf32>
    %854 = arith.addf %852, %853 : vector<4x256xf32>
    %855 = arith.mulf %1, %854 : vector<4x256xf32>
    %856 = arith.addf %855, %3 : vector<4x256xf32>
    %cst_129 = arith.constant 0.000000e+00 : f32
    %857 = vector.broadcast %cst_129 : f32 to vector<4x256xf32>
    %858 = vector.extract_strided_slice %856 {offsets = [0, 239], sizes = [4, 17], strides = [1, 1]} : vector<4x256xf32> to vector<4x17xf32>
    %859 = vector.extract_strided_slice %856 {offsets = [0, 0], sizes = [4, 239], strides = [1, 1]} : vector<4x256xf32> to vector<4x239xf32>
    %860 = tpu.concatenate %858, %859 in 1 : vector<4x17xf32>, vector<4x239xf32> -> vector<4x256xf32>
    %c0_130 = arith.constant 0 : index
    %c0_131 = arith.constant 0 : index
    %861 = vector.load %arg9[%c0_130, %c0_131] : memref<9x256xf32, #tpu.memory_space<vmem>>, vector<1x256xf32>
    %862 = vector.broadcast %861 : vector<1x256xf32> to vector<4x256xf32>
    %863 = arith.mulf %860, %862 : vector<4x256xf32>
    %c0_132 = arith.constant 0 : index
    %c0_133 = arith.constant 0 : index
    %864 = vector.load %arg10[%c0_132, %c0_133] : memref<4x36xf32, #tpu.memory_space<vmem>>, vector<4x1xf32>
    %865 = vector.extract_strided_slice %863 {offsets = [0, 0], sizes = [1, 256], strides = [1, 1]} : vector<4x256xf32> to vector<1x256xf32>
    %866 = vector.broadcast %864 : vector<4x1xf32> to vector<4x256xf32>
    %867 = vector.broadcast %865 : vector<1x256xf32> to vector<4x256xf32>
    %868 = arith.mulf %866, %867 : vector<4x256xf32>
    %869 = arith.addf %857, %868 : vector<4x256xf32>
    %c0_134 = arith.constant 0 : index
    %c1_135 = arith.constant 1 : index
    %870 = vector.load %arg10[%c0_134, %c1_135] : memref<4x36xf32, #tpu.memory_space<vmem>>, vector<4x1xf32>
    %871 = vector.extract_strided_slice %863 {offsets = [1, 0], sizes = [1, 256], strides = [1, 1]} : vector<4x256xf32> to vector<1x256xf32>
    %872 = vector.broadcast %870 : vector<4x1xf32> to vector<4x256xf32>
    %873 = vector.broadcast %871 : vector<1x256xf32> to vector<4x256xf32>
    %874 = arith.mulf %872, %873 : vector<4x256xf32>
    %875 = arith.addf %869, %874 : vector<4x256xf32>
    %c0_136 = arith.constant 0 : index
    %c2_137 = arith.constant 2 : index
    %876 = vector.load %arg10[%c0_136, %c2_137] : memref<4x36xf32, #tpu.memory_space<vmem>>, vector<4x1xf32>
    %877 = vector.extract_strided_slice %863 {offsets = [2, 0], sizes = [1, 256], strides = [1, 1]} : vector<4x256xf32> to vector<1x256xf32>
    %878 = vector.broadcast %876 : vector<4x1xf32> to vector<4x256xf32>
    %879 = vector.broadcast %877 : vector<1x256xf32> to vector<4x256xf32>
    %880 = arith.mulf %878, %879 : vector<4x256xf32>
    %881 = arith.addf %875, %880 : vector<4x256xf32>
    %c0_138 = arith.constant 0 : index
    %c3_139 = arith.constant 3 : index
    %882 = vector.load %arg10[%c0_138, %c3_139] : memref<4x36xf32, #tpu.memory_space<vmem>>, vector<4x1xf32>
    %883 = vector.extract_strided_slice %863 {offsets = [3, 0], sizes = [1, 256], strides = [1, 1]} : vector<4x256xf32> to vector<1x256xf32>
    %884 = vector.broadcast %882 : vector<4x1xf32> to vector<4x256xf32>
    %885 = vector.broadcast %883 : vector<1x256xf32> to vector<4x256xf32>
    %886 = arith.mulf %884, %885 : vector<4x256xf32>
    %887 = arith.addf %881, %886 : vector<4x256xf32>
    %888 = vector.extract_strided_slice %856 {offsets = [0, 240], sizes = [4, 16], strides = [1, 1]} : vector<4x256xf32> to vector<4x16xf32>
    %889 = vector.extract_strided_slice %856 {offsets = [0, 0], sizes = [4, 240], strides = [1, 1]} : vector<4x256xf32> to vector<4x240xf32>
    %890 = tpu.concatenate %888, %889 in 1 : vector<4x16xf32>, vector<4x240xf32> -> vector<4x256xf32>
    %c1_140 = arith.constant 1 : index
    %c0_141 = arith.constant 0 : index
    %891 = vector.load %arg9[%c1_140, %c0_141] : memref<9x256xf32, #tpu.memory_space<vmem>>, vector<1x256xf32>
    %892 = vector.broadcast %891 : vector<1x256xf32> to vector<4x256xf32>
    %893 = arith.mulf %890, %892 : vector<4x256xf32>
    %c0_142 = arith.constant 0 : index
    %c4_143 = arith.constant 4 : index
    %894 = vector.load %arg10[%c0_142, %c4_143] : memref<4x36xf32, #tpu.memory_space<vmem>>, vector<4x1xf32>
    %895 = vector.extract_strided_slice %893 {offsets = [0, 0], sizes = [1, 256], strides = [1, 1]} : vector<4x256xf32> to vector<1x256xf32>
    %896 = vector.broadcast %894 : vector<4x1xf32> to vector<4x256xf32>
    %897 = vector.broadcast %895 : vector<1x256xf32> to vector<4x256xf32>
    %898 = arith.mulf %896, %897 : vector<4x256xf32>
    %899 = arith.addf %887, %898 : vector<4x256xf32>
    %c0_144 = arith.constant 0 : index
    %c5_145 = arith.constant 5 : index
    %900 = vector.load %arg10[%c0_144, %c5_145] : memref<4x36xf32, #tpu.memory_space<vmem>>, vector<4x1xf32>
    %901 = vector.extract_strided_slice %893 {offsets = [1, 0], sizes = [1, 256], strides = [1, 1]} : vector<4x256xf32> to vector<1x256xf32>
    %902 = vector.broadcast %900 : vector<4x1xf32> to vector<4x256xf32>
    %903 = vector.broadcast %901 : vector<1x256xf32> to vector<4x256xf32>
    %904 = arith.mulf %902, %903 : vector<4x256xf32>
    %905 = arith.addf %899, %904 : vector<4x256xf32>
    %c0_146 = arith.constant 0 : index
    %c6_147 = arith.constant 6 : index
    %906 = vector.load %arg10[%c0_146, %c6_147] : memref<4x36xf32, #tpu.memory_space<vmem>>, vector<4x1xf32>
    %907 = vector.extract_strided_slice %893 {offsets = [2, 0], sizes = [1, 256], strides = [1, 1]} : vector<4x256xf32> to vector<1x256xf32>
    %908 = vector.broadcast %906 : vector<4x1xf32> to vector<4x256xf32>
    %909 = vector.broadcast %907 : vector<1x256xf32> to vector<4x256xf32>
    %910 = arith.mulf %908, %909 : vector<4x256xf32>
    %911 = arith.addf %905, %910 : vector<4x256xf32>
    %c0_148 = arith.constant 0 : index
    %c7_149 = arith.constant 7 : index
    %912 = vector.load %arg10[%c0_148, %c7_149] : memref<4x36xf32, #tpu.memory_space<vmem>>, vector<4x1xf32>
    %913 = vector.extract_strided_slice %893 {offsets = [3, 0], sizes = [1, 256], strides = [1, 1]} : vector<4x256xf32> to vector<1x256xf32>
    %914 = vector.broadcast %912 : vector<4x1xf32> to vector<4x256xf32>
    %915 = vector.broadcast %913 : vector<1x256xf32> to vector<4x256xf32>
    %916 = arith.mulf %914, %915 : vector<4x256xf32>
    %917 = arith.addf %911, %916 : vector<4x256xf32>
    %918 = vector.extract_strided_slice %856 {offsets = [0, 241], sizes = [4, 15], strides = [1, 1]} : vector<4x256xf32> to vector<4x15xf32>
    %919 = vector.extract_strided_slice %856 {offsets = [0, 0], sizes = [4, 241], strides = [1, 1]} : vector<4x256xf32> to vector<4x241xf32>
    %920 = tpu.concatenate %918, %919 in 1 : vector<4x15xf32>, vector<4x241xf32> -> vector<4x256xf32>
    %c2_150 = arith.constant 2 : index
    %c0_151 = arith.constant 0 : index
    %921 = vector.load %arg9[%c2_150, %c0_151] : memref<9x256xf32, #tpu.memory_space<vmem>>, vector<1x256xf32>
    %922 = vector.broadcast %921 : vector<1x256xf32> to vector<4x256xf32>
    %923 = arith.mulf %920, %922 : vector<4x256xf32>
    %c0_152 = arith.constant 0 : index
    %c8_153 = arith.constant 8 : index
    %924 = vector.load %arg10[%c0_152, %c8_153] : memref<4x36xf32, #tpu.memory_space<vmem>>, vector<4x1xf32>
    %925 = vector.extract_strided_slice %923 {offsets = [0, 0], sizes = [1, 256], strides = [1, 1]} : vector<4x256xf32> to vector<1x256xf32>
    %926 = vector.broadcast %924 : vector<4x1xf32> to vector<4x256xf32>
    %927 = vector.broadcast %925 : vector<1x256xf32> to vector<4x256xf32>
    %928 = arith.mulf %926, %927 : vector<4x256xf32>
    %929 = arith.addf %917, %928 : vector<4x256xf32>
    %c0_154 = arith.constant 0 : index
    %c9_155 = arith.constant 9 : index
    %930 = vector.load %arg10[%c0_154, %c9_155] : memref<4x36xf32, #tpu.memory_space<vmem>>, vector<4x1xf32>
    %931 = vector.extract_strided_slice %923 {offsets = [1, 0], sizes = [1, 256], strides = [1, 1]} : vector<4x256xf32> to vector<1x256xf32>
    %932 = vector.broadcast %930 : vector<4x1xf32> to vector<4x256xf32>
    %933 = vector.broadcast %931 : vector<1x256xf32> to vector<4x256xf32>
    %934 = arith.mulf %932, %933 : vector<4x256xf32>
    %935 = arith.addf %929, %934 : vector<4x256xf32>
    %c0_156 = arith.constant 0 : index
    %c10_157 = arith.constant 10 : index
    %936 = vector.load %arg10[%c0_156, %c10_157] : memref<4x36xf32, #tpu.memory_space<vmem>>, vector<4x1xf32>
    %937 = vector.extract_strided_slice %923 {offsets = [2, 0], sizes = [1, 256], strides = [1, 1]} : vector<4x256xf32> to vector<1x256xf32>
    %938 = vector.broadcast %936 : vector<4x1xf32> to vector<4x256xf32>
    %939 = vector.broadcast %937 : vector<1x256xf32> to vector<4x256xf32>
    %940 = arith.mulf %938, %939 : vector<4x256xf32>
    %941 = arith.addf %935, %940 : vector<4x256xf32>
    %c0_158 = arith.constant 0 : index
    %c11_159 = arith.constant 11 : index
    %942 = vector.load %arg10[%c0_158, %c11_159] : memref<4x36xf32, #tpu.memory_space<vmem>>, vector<4x1xf32>
    %943 = vector.extract_strided_slice %923 {offsets = [3, 0], sizes = [1, 256], strides = [1, 1]} : vector<4x256xf32> to vector<1x256xf32>
    %944 = vector.broadcast %942 : vector<4x1xf32> to vector<4x256xf32>
    %945 = vector.broadcast %943 : vector<1x256xf32> to vector<4x256xf32>
    %946 = arith.mulf %944, %945 : vector<4x256xf32>
    %947 = arith.addf %941, %946 : vector<4x256xf32>
    %948 = vector.extract_strided_slice %856 {offsets = [0, 255], sizes = [4, 1], strides = [1, 1]} : vector<4x256xf32> to vector<4x1xf32>
    %949 = vector.extract_strided_slice %856 {offsets = [0, 0], sizes = [4, 255], strides = [1, 1]} : vector<4x256xf32> to vector<4x255xf32>
    %950 = tpu.concatenate %948, %949 in 1 : vector<4x1xf32>, vector<4x255xf32> -> vector<4x256xf32>
    %c3_160 = arith.constant 3 : index
    %c0_161 = arith.constant 0 : index
    %951 = vector.load %arg9[%c3_160, %c0_161] : memref<9x256xf32, #tpu.memory_space<vmem>>, vector<1x256xf32>
    %952 = vector.broadcast %951 : vector<1x256xf32> to vector<4x256xf32>
    %953 = arith.mulf %950, %952 : vector<4x256xf32>
    %c0_162 = arith.constant 0 : index
    %c12_163 = arith.constant 12 : index
    %954 = vector.load %arg10[%c0_162, %c12_163] : memref<4x36xf32, #tpu.memory_space<vmem>>, vector<4x1xf32>
    %955 = vector.extract_strided_slice %953 {offsets = [0, 0], sizes = [1, 256], strides = [1, 1]} : vector<4x256xf32> to vector<1x256xf32>
    %956 = vector.broadcast %954 : vector<4x1xf32> to vector<4x256xf32>
    %957 = vector.broadcast %955 : vector<1x256xf32> to vector<4x256xf32>
    %958 = arith.mulf %956, %957 : vector<4x256xf32>
    %959 = arith.addf %947, %958 : vector<4x256xf32>
    %c0_164 = arith.constant 0 : index
    %c13_165 = arith.constant 13 : index
    %960 = vector.load %arg10[%c0_164, %c13_165] : memref<4x36xf32, #tpu.memory_space<vmem>>, vector<4x1xf32>
    %961 = vector.extract_strided_slice %953 {offsets = [1, 0], sizes = [1, 256], strides = [1, 1]} : vector<4x256xf32> to vector<1x256xf32>
    %962 = vector.broadcast %960 : vector<4x1xf32> to vector<4x256xf32>
    %963 = vector.broadcast %961 : vector<1x256xf32> to vector<4x256xf32>
    %964 = arith.mulf %962, %963 : vector<4x256xf32>
    %965 = arith.addf %959, %964 : vector<4x256xf32>
    %c0_166 = arith.constant 0 : index
    %c14_167 = arith.constant 14 : index
    %966 = vector.load %arg10[%c0_166, %c14_167] : memref<4x36xf32, #tpu.memory_space<vmem>>, vector<4x1xf32>
    %967 = vector.extract_strided_slice %953 {offsets = [2, 0], sizes = [1, 256], strides = [1, 1]} : vector<4x256xf32> to vector<1x256xf32>
    %968 = vector.broadcast %966 : vector<4x1xf32> to vector<4x256xf32>
    %969 = vector.broadcast %967 : vector<1x256xf32> to vector<4x256xf32>
    %970 = arith.mulf %968, %969 : vector<4x256xf32>
    %971 = arith.addf %965, %970 : vector<4x256xf32>
    %c0_168 = arith.constant 0 : index
    %c15_169 = arith.constant 15 : index
    %972 = vector.load %arg10[%c0_168, %c15_169] : memref<4x36xf32, #tpu.memory_space<vmem>>, vector<4x1xf32>
    %973 = vector.extract_strided_slice %953 {offsets = [3, 0], sizes = [1, 256], strides = [1, 1]} : vector<4x256xf32> to vector<1x256xf32>
    %974 = vector.broadcast %972 : vector<4x1xf32> to vector<4x256xf32>
    %975 = vector.broadcast %973 : vector<1x256xf32> to vector<4x256xf32>
    %976 = arith.mulf %974, %975 : vector<4x256xf32>
    %977 = arith.addf %971, %976 : vector<4x256xf32>
    %c4_170 = arith.constant 4 : index
    %c0_171 = arith.constant 0 : index
    %978 = vector.load %arg9[%c4_170, %c0_171] : memref<9x256xf32, #tpu.memory_space<vmem>>, vector<1x256xf32>
    %979 = vector.broadcast %978 : vector<1x256xf32> to vector<4x256xf32>
    %980 = arith.mulf %856, %979 : vector<4x256xf32>
    %c0_172 = arith.constant 0 : index
    %c16_173 = arith.constant 16 : index
    %981 = vector.load %arg10[%c0_172, %c16_173] : memref<4x36xf32, #tpu.memory_space<vmem>>, vector<4x1xf32>
    %982 = vector.extract_strided_slice %980 {offsets = [0, 0], sizes = [1, 256], strides = [1, 1]} : vector<4x256xf32> to vector<1x256xf32>
    %983 = vector.broadcast %981 : vector<4x1xf32> to vector<4x256xf32>
    %984 = vector.broadcast %982 : vector<1x256xf32> to vector<4x256xf32>
    %985 = arith.mulf %983, %984 : vector<4x256xf32>
    %986 = arith.addf %977, %985 : vector<4x256xf32>
    %c0_174 = arith.constant 0 : index
    %c17_175 = arith.constant 17 : index
    %987 = vector.load %arg10[%c0_174, %c17_175] : memref<4x36xf32, #tpu.memory_space<vmem>>, vector<4x1xf32>
    %988 = vector.extract_strided_slice %980 {offsets = [1, 0], sizes = [1, 256], strides = [1, 1]} : vector<4x256xf32> to vector<1x256xf32>
    %989 = vector.broadcast %987 : vector<4x1xf32> to vector<4x256xf32>
    %990 = vector.broadcast %988 : vector<1x256xf32> to vector<4x256xf32>
    %991 = arith.mulf %989, %990 : vector<4x256xf32>
    %992 = arith.addf %986, %991 : vector<4x256xf32>
    %c0_176 = arith.constant 0 : index
    %c18_177 = arith.constant 18 : index
    %993 = vector.load %arg10[%c0_176, %c18_177] : memref<4x36xf32, #tpu.memory_space<vmem>>, vector<4x1xf32>
    %994 = vector.extract_strided_slice %980 {offsets = [2, 0], sizes = [1, 256], strides = [1, 1]} : vector<4x256xf32> to vector<1x256xf32>
    %995 = vector.broadcast %993 : vector<4x1xf32> to vector<4x256xf32>
    %996 = vector.broadcast %994 : vector<1x256xf32> to vector<4x256xf32>
    %997 = arith.mulf %995, %996 : vector<4x256xf32>
    %998 = arith.addf %992, %997 : vector<4x256xf32>
    %c0_178 = arith.constant 0 : index
    %c19_179 = arith.constant 19 : index
    %999 = vector.load %arg10[%c0_178, %c19_179] : memref<4x36xf32, #tpu.memory_space<vmem>>, vector<4x1xf32>
    %1000 = vector.extract_strided_slice %980 {offsets = [3, 0], sizes = [1, 256], strides = [1, 1]} : vector<4x256xf32> to vector<1x256xf32>
    %1001 = vector.broadcast %999 : vector<4x1xf32> to vector<4x256xf32>
    %1002 = vector.broadcast %1000 : vector<1x256xf32> to vector<4x256xf32>
    %1003 = arith.mulf %1001, %1002 : vector<4x256xf32>
    %1004 = arith.addf %998, %1003 : vector<4x256xf32>
    %1005 = vector.extract_strided_slice %856 {offsets = [0, 1], sizes = [4, 255], strides = [1, 1]} : vector<4x256xf32> to vector<4x255xf32>
    %1006 = vector.extract_strided_slice %856 {offsets = [0, 0], sizes = [4, 1], strides = [1, 1]} : vector<4x256xf32> to vector<4x1xf32>
    %1007 = tpu.concatenate %1005, %1006 in 1 : vector<4x255xf32>, vector<4x1xf32> -> vector<4x256xf32>
    %c5_180 = arith.constant 5 : index
    %c0_181 = arith.constant 0 : index
    %1008 = vector.load %arg9[%c5_180, %c0_181] : memref<9x256xf32, #tpu.memory_space<vmem>>, vector<1x256xf32>
    %1009 = vector.broadcast %1008 : vector<1x256xf32> to vector<4x256xf32>
    %1010 = arith.mulf %1007, %1009 : vector<4x256xf32>
    %c0_182 = arith.constant 0 : index
    %c20_183 = arith.constant 20 : index
    %1011 = vector.load %arg10[%c0_182, %c20_183] : memref<4x36xf32, #tpu.memory_space<vmem>>, vector<4x1xf32>
    %1012 = vector.extract_strided_slice %1010 {offsets = [0, 0], sizes = [1, 256], strides = [1, 1]} : vector<4x256xf32> to vector<1x256xf32>
    %1013 = vector.broadcast %1011 : vector<4x1xf32> to vector<4x256xf32>
    %1014 = vector.broadcast %1012 : vector<1x256xf32> to vector<4x256xf32>
    %1015 = arith.mulf %1013, %1014 : vector<4x256xf32>
    %1016 = arith.addf %1004, %1015 : vector<4x256xf32>
    %c0_184 = arith.constant 0 : index
    %c21_185 = arith.constant 21 : index
    %1017 = vector.load %arg10[%c0_184, %c21_185] : memref<4x36xf32, #tpu.memory_space<vmem>>, vector<4x1xf32>
    %1018 = vector.extract_strided_slice %1010 {offsets = [1, 0], sizes = [1, 256], strides = [1, 1]} : vector<4x256xf32> to vector<1x256xf32>
    %1019 = vector.broadcast %1017 : vector<4x1xf32> to vector<4x256xf32>
    %1020 = vector.broadcast %1018 : vector<1x256xf32> to vector<4x256xf32>
    %1021 = arith.mulf %1019, %1020 : vector<4x256xf32>
    %1022 = arith.addf %1016, %1021 : vector<4x256xf32>
    %c0_186 = arith.constant 0 : index
    %c22_187 = arith.constant 22 : index
    %1023 = vector.load %arg10[%c0_186, %c22_187] : memref<4x36xf32, #tpu.memory_space<vmem>>, vector<4x1xf32>
    %1024 = vector.extract_strided_slice %1010 {offsets = [2, 0], sizes = [1, 256], strides = [1, 1]} : vector<4x256xf32> to vector<1x256xf32>
    %1025 = vector.broadcast %1023 : vector<4x1xf32> to vector<4x256xf32>
    %1026 = vector.broadcast %1024 : vector<1x256xf32> to vector<4x256xf32>
    %1027 = arith.mulf %1025, %1026 : vector<4x256xf32>
    %1028 = arith.addf %1022, %1027 : vector<4x256xf32>
    %c0_188 = arith.constant 0 : index
    %c23_189 = arith.constant 23 : index
    %1029 = vector.load %arg10[%c0_188, %c23_189] : memref<4x36xf32, #tpu.memory_space<vmem>>, vector<4x1xf32>
    %1030 = vector.extract_strided_slice %1010 {offsets = [3, 0], sizes = [1, 256], strides = [1, 1]} : vector<4x256xf32> to vector<1x256xf32>
    %1031 = vector.broadcast %1029 : vector<4x1xf32> to vector<4x256xf32>
    %1032 = vector.broadcast %1030 : vector<1x256xf32> to vector<4x256xf32>
    %1033 = arith.mulf %1031, %1032 : vector<4x256xf32>
    %1034 = arith.addf %1028, %1033 : vector<4x256xf32>
    %1035 = vector.extract_strided_slice %856 {offsets = [0, 15], sizes = [4, 241], strides = [1, 1]} : vector<4x256xf32> to vector<4x241xf32>
    %1036 = vector.extract_strided_slice %856 {offsets = [0, 0], sizes = [4, 15], strides = [1, 1]} : vector<4x256xf32> to vector<4x15xf32>
    %1037 = tpu.concatenate %1035, %1036 in 1 : vector<4x241xf32>, vector<4x15xf32> -> vector<4x256xf32>
    %c6_190 = arith.constant 6 : index
    %c0_191 = arith.constant 0 : index
    %1038 = vector.load %arg9[%c6_190, %c0_191] : memref<9x256xf32, #tpu.memory_space<vmem>>, vector<1x256xf32>
    %1039 = vector.broadcast %1038 : vector<1x256xf32> to vector<4x256xf32>
    %1040 = arith.mulf %1037, %1039 : vector<4x256xf32>
    %c0_192 = arith.constant 0 : index
    %c24_193 = arith.constant 24 : index
    %1041 = vector.load %arg10[%c0_192, %c24_193] : memref<4x36xf32, #tpu.memory_space<vmem>>, vector<4x1xf32>
    %1042 = vector.extract_strided_slice %1040 {offsets = [0, 0], sizes = [1, 256], strides = [1, 1]} : vector<4x256xf32> to vector<1x256xf32>
    %1043 = vector.broadcast %1041 : vector<4x1xf32> to vector<4x256xf32>
    %1044 = vector.broadcast %1042 : vector<1x256xf32> to vector<4x256xf32>
    %1045 = arith.mulf %1043, %1044 : vector<4x256xf32>
    %1046 = arith.addf %1034, %1045 : vector<4x256xf32>
    %c0_194 = arith.constant 0 : index
    %c25_195 = arith.constant 25 : index
    %1047 = vector.load %arg10[%c0_194, %c25_195] : memref<4x36xf32, #tpu.memory_space<vmem>>, vector<4x1xf32>
    %1048 = vector.extract_strided_slice %1040 {offsets = [1, 0], sizes = [1, 256], strides = [1, 1]} : vector<4x256xf32> to vector<1x256xf32>
    %1049 = vector.broadcast %1047 : vector<4x1xf32> to vector<4x256xf32>
    %1050 = vector.broadcast %1048 : vector<1x256xf32> to vector<4x256xf32>
    %1051 = arith.mulf %1049, %1050 : vector<4x256xf32>
    %1052 = arith.addf %1046, %1051 : vector<4x256xf32>
    %c0_196 = arith.constant 0 : index
    %c26_197 = arith.constant 26 : index
    %1053 = vector.load %arg10[%c0_196, %c26_197] : memref<4x36xf32, #tpu.memory_space<vmem>>, vector<4x1xf32>
    %1054 = vector.extract_strided_slice %1040 {offsets = [2, 0], sizes = [1, 256], strides = [1, 1]} : vector<4x256xf32> to vector<1x256xf32>
    %1055 = vector.broadcast %1053 : vector<4x1xf32> to vector<4x256xf32>
    %1056 = vector.broadcast %1054 : vector<1x256xf32> to vector<4x256xf32>
    %1057 = arith.mulf %1055, %1056 : vector<4x256xf32>
    %1058 = arith.addf %1052, %1057 : vector<4x256xf32>
    %c0_198 = arith.constant 0 : index
    %c27_199 = arith.constant 27 : index
    %1059 = vector.load %arg10[%c0_198, %c27_199] : memref<4x36xf32, #tpu.memory_space<vmem>>, vector<4x1xf32>
    %1060 = vector.extract_strided_slice %1040 {offsets = [3, 0], sizes = [1, 256], strides = [1, 1]} : vector<4x256xf32> to vector<1x256xf32>
    %1061 = vector.broadcast %1059 : vector<4x1xf32> to vector<4x256xf32>
    %1062 = vector.broadcast %1060 : vector<1x256xf32> to vector<4x256xf32>
    %1063 = arith.mulf %1061, %1062 : vector<4x256xf32>
    %1064 = arith.addf %1058, %1063 : vector<4x256xf32>
    %1065 = vector.extract_strided_slice %856 {offsets = [0, 16], sizes = [4, 240], strides = [1, 1]} : vector<4x256xf32> to vector<4x240xf32>
    %1066 = vector.extract_strided_slice %856 {offsets = [0, 0], sizes = [4, 16], strides = [1, 1]} : vector<4x256xf32> to vector<4x16xf32>
    %1067 = tpu.concatenate %1065, %1066 in 1 : vector<4x240xf32>, vector<4x16xf32> -> vector<4x256xf32>
    %c7_200 = arith.constant 7 : index
    %c0_201 = arith.constant 0 : index
    %1068 = vector.load %arg9[%c7_200, %c0_201] : memref<9x256xf32, #tpu.memory_space<vmem>>, vector<1x256xf32>
    %1069 = vector.broadcast %1068 : vector<1x256xf32> to vector<4x256xf32>
    %1070 = arith.mulf %1067, %1069 : vector<4x256xf32>
    %c0_202 = arith.constant 0 : index
    %c28_203 = arith.constant 28 : index
    %1071 = vector.load %arg10[%c0_202, %c28_203] : memref<4x36xf32, #tpu.memory_space<vmem>>, vector<4x1xf32>
    %1072 = vector.extract_strided_slice %1070 {offsets = [0, 0], sizes = [1, 256], strides = [1, 1]} : vector<4x256xf32> to vector<1x256xf32>
    %1073 = vector.broadcast %1071 : vector<4x1xf32> to vector<4x256xf32>
    %1074 = vector.broadcast %1072 : vector<1x256xf32> to vector<4x256xf32>
    %1075 = arith.mulf %1073, %1074 : vector<4x256xf32>
    %1076 = arith.addf %1064, %1075 : vector<4x256xf32>
    %c0_204 = arith.constant 0 : index
    %c29_205 = arith.constant 29 : index
    %1077 = vector.load %arg10[%c0_204, %c29_205] : memref<4x36xf32, #tpu.memory_space<vmem>>, vector<4x1xf32>
    %1078 = vector.extract_strided_slice %1070 {offsets = [1, 0], sizes = [1, 256], strides = [1, 1]} : vector<4x256xf32> to vector<1x256xf32>
    %1079 = vector.broadcast %1077 : vector<4x1xf32> to vector<4x256xf32>
    %1080 = vector.broadcast %1078 : vector<1x256xf32> to vector<4x256xf32>
    %1081 = arith.mulf %1079, %1080 : vector<4x256xf32>
    %1082 = arith.addf %1076, %1081 : vector<4x256xf32>
    %c0_206 = arith.constant 0 : index
    %c30_207 = arith.constant 30 : index
    %1083 = vector.load %arg10[%c0_206, %c30_207] : memref<4x36xf32, #tpu.memory_space<vmem>>, vector<4x1xf32>
    %1084 = vector.extract_strided_slice %1070 {offsets = [2, 0], sizes = [1, 256], strides = [1, 1]} : vector<4x256xf32> to vector<1x256xf32>
    %1085 = vector.broadcast %1083 : vector<4x1xf32> to vector<4x256xf32>
    %1086 = vector.broadcast %1084 : vector<1x256xf32> to vector<4x256xf32>
    %1087 = arith.mulf %1085, %1086 : vector<4x256xf32>
    %1088 = arith.addf %1082, %1087 : vector<4x256xf32>
    %c0_208 = arith.constant 0 : index
    %c31_209 = arith.constant 31 : index
    %1089 = vector.load %arg10[%c0_208, %c31_209] : memref<4x36xf32, #tpu.memory_space<vmem>>, vector<4x1xf32>
    %1090 = vector.extract_strided_slice %1070 {offsets = [3, 0], sizes = [1, 256], strides = [1, 1]} : vector<4x256xf32> to vector<1x256xf32>
    %1091 = vector.broadcast %1089 : vector<4x1xf32> to vector<4x256xf32>
    %1092 = vector.broadcast %1090 : vector<1x256xf32> to vector<4x256xf32>
    %1093 = arith.mulf %1091, %1092 : vector<4x256xf32>
    %1094 = arith.addf %1088, %1093 : vector<4x256xf32>
    %1095 = vector.extract_strided_slice %856 {offsets = [0, 17], sizes = [4, 239], strides = [1, 1]} : vector<4x256xf32> to vector<4x239xf32>
    %1096 = vector.extract_strided_slice %856 {offsets = [0, 0], sizes = [4, 17], strides = [1, 1]} : vector<4x256xf32> to vector<4x17xf32>
    %1097 = tpu.concatenate %1095, %1096 in 1 : vector<4x239xf32>, vector<4x17xf32> -> vector<4x256xf32>
    %c8_210 = arith.constant 8 : index
    %c0_211 = arith.constant 0 : index
    %1098 = vector.load %arg9[%c8_210, %c0_211] : memref<9x256xf32, #tpu.memory_space<vmem>>, vector<1x256xf32>
    %1099 = vector.broadcast %1098 : vector<1x256xf32> to vector<4x256xf32>
    %1100 = arith.mulf %1097, %1099 : vector<4x256xf32>
    %c0_212 = arith.constant 0 : index
    %c32_213 = arith.constant 32 : index
    %1101 = vector.load %arg10[%c0_212, %c32_213] : memref<4x36xf32, #tpu.memory_space<vmem>>, vector<4x1xf32>
    %1102 = vector.extract_strided_slice %1100 {offsets = [0, 0], sizes = [1, 256], strides = [1, 1]} : vector<4x256xf32> to vector<1x256xf32>
    %1103 = vector.broadcast %1101 : vector<4x1xf32> to vector<4x256xf32>
    %1104 = vector.broadcast %1102 : vector<1x256xf32> to vector<4x256xf32>
    %1105 = arith.mulf %1103, %1104 : vector<4x256xf32>
    %1106 = arith.addf %1094, %1105 : vector<4x256xf32>
    %c0_214 = arith.constant 0 : index
    %c33_215 = arith.constant 33 : index
    %1107 = vector.load %arg10[%c0_214, %c33_215] : memref<4x36xf32, #tpu.memory_space<vmem>>, vector<4x1xf32>
    %1108 = vector.extract_strided_slice %1100 {offsets = [1, 0], sizes = [1, 256], strides = [1, 1]} : vector<4x256xf32> to vector<1x256xf32>
    %1109 = vector.broadcast %1107 : vector<4x1xf32> to vector<4x256xf32>
    %1110 = vector.broadcast %1108 : vector<1x256xf32> to vector<4x256xf32>
    %1111 = arith.mulf %1109, %1110 : vector<4x256xf32>
    %1112 = arith.addf %1106, %1111 : vector<4x256xf32>
    %c0_216 = arith.constant 0 : index
    %c34_217 = arith.constant 34 : index
    %1113 = vector.load %arg10[%c0_216, %c34_217] : memref<4x36xf32, #tpu.memory_space<vmem>>, vector<4x1xf32>
    %1114 = vector.extract_strided_slice %1100 {offsets = [2, 0], sizes = [1, 256], strides = [1, 1]} : vector<4x256xf32> to vector<1x256xf32>
    %1115 = vector.broadcast %1113 : vector<4x1xf32> to vector<4x256xf32>
    %1116 = vector.broadcast %1114 : vector<1x256xf32> to vector<4x256xf32>
    %1117 = arith.mulf %1115, %1116 : vector<4x256xf32>
    %1118 = arith.addf %1112, %1117 : vector<4x256xf32>
    %c0_218 = arith.constant 0 : index
    %c35_219 = arith.constant 35 : index
    %1119 = vector.load %arg10[%c0_218, %c35_219] : memref<4x36xf32, #tpu.memory_space<vmem>>, vector<4x1xf32>
    %1120 = vector.extract_strided_slice %1100 {offsets = [3, 0], sizes = [1, 256], strides = [1, 1]} : vector<4x256xf32> to vector<1x256xf32>
    %1121 = vector.broadcast %1119 : vector<4x1xf32> to vector<4x256xf32>
    %1122 = vector.broadcast %1120 : vector<1x256xf32> to vector<4x256xf32>
    %1123 = arith.mulf %1121, %1122 : vector<4x256xf32>
    %1124 = arith.addf %1118, %1123 : vector<4x256xf32>
    %c0_220 = arith.constant 0 : index
    %c0_221 = arith.constant 0 : index
    %1125 = vector.load %arg11[%c0_220, %c0_221] : memref<4x1xf32, #tpu.memory_space<vmem>>, vector<4x1xf32>
    %1126 = vector.broadcast %1125 : vector<4x1xf32> to vector<4x256xf32>
    %1127 = arith.addf %1124, %1126 : vector<4x256xf32>
    %1128 = arith.negf %1127 : vector<4x256xf32>
    %1129 = math.exp %1128 : vector<4x256xf32>
    %cst_222 = arith.constant 1.000000e+00 : f32
    %1130 = vector.broadcast %cst_222 : f32 to vector<4x256xf32>
    %1131 = arith.addf %1130, %1129 : vector<4x256xf32>
    %1132 = arith.divf %1130, %1131 : vector<4x256xf32>
    %1133 = arith.mulf %1127, %1132 : vector<4x256xf32>
    %c0_223 = arith.constant 0 : index
    %c0_224 = arith.constant 0 : index
    %c0_225 = arith.constant 0 : index
    %1134 = vector.load %arg12[%c0_223, %c0_224, %c0_225] : memref<1x4x256xf32, #tpu.memory_space<vmem>>, vector<1x4x256xf32>
    %1135 = vector.shape_cast %1134 : vector<1x4x256xf32> to vector<4x256xf32>
    %1136 = vector.shape_cast %1133 : vector<4x256xf32> to vector<1x4x256xf32>
    tpu.vector_store %arg12[%c0_223, %c0_224, %c0_225], %1136 {strides = array<i32>} : memref<1x4x256xf32, #tpu.memory_space<vmem>>, vector<1x4x256xf32>,
    return
  }
  func.func @transform_0(%arg0: i32) -> (i32, i32, i32) {
    %c0_i32 = arith.constant 0 : i32
    %c0_i32_0 = arith.constant 0 : i32
    %c0_i32_1 = arith.constant 0 : i32
    return %arg0, %c0_i32, %c0_i32_0 : i32, i32, i32
  }
  func.func @transform_1(%arg0: i32) -> (i32, i32, i32) {
    %c0_i32 = arith.constant 0 : i32
    %c0_i32_0 = arith.constant 0 : i32
    %c0_i32_1 = arith.constant 0 : i32
    return %arg0, %c0_i32, %c0_i32_0 : i32, i32, i32
  }
  func.func @transform_2(%arg0: i32) -> (i32, i32) {
    %c0_i32 = arith.constant 0 : i32
    %c0_i32_0 = arith.constant 0 : i32
    %c0_i32_1 = arith.constant 0 : i32
    return %c0_i32, %c0_i32_0 : i32, i32
  }
  func.func @transform_3(%arg0: i32) -> (i32, i32) {
    %c0_i32 = arith.constant 0 : i32
    %c0_i32_0 = arith.constant 0 : i32
    %c0_i32_1 = arith.constant 0 : i32
    return %c0_i32, %c0_i32_0 : i32, i32
  }
  func.func @transform_4(%arg0: i32) -> (i32, i32) {
    %c0_i32 = arith.constant 0 : i32
    %c0_i32_0 = arith.constant 0 : i32
    %c0_i32_1 = arith.constant 0 : i32
    return %c0_i32, %c0_i32_0 : i32, i32
  }
  func.func @transform_5(%arg0: i32) -> (i32, i32) {
    %c0_i32 = arith.constant 0 : i32
    %c0_i32_0 = arith.constant 0 : i32
    %c0_i32_1 = arith.constant 0 : i32
    return %c0_i32, %c0_i32_0 : i32, i32
  }
  func.func @transform_6(%arg0: i32) -> i32 {
    %c0_i32 = arith.constant 0 : i32
    %c0_i32_0 = arith.constant 0 : i32
    return %c0_i32 : i32
  }
  func.func @transform_7(%arg0: i32) -> (i32, i32) {
    %c0_i32 = arith.constant 0 : i32
    %c0_i32_0 = arith.constant 0 : i32
    %c0_i32_1 = arith.constant 0 : i32
    return %c0_i32, %c0_i32_0 : i32, i32
  }
  func.func @transform_8(%arg0: i32) -> (i32, i32) {
    %c0_i32 = arith.constant 0 : i32
    %c0_i32_0 = arith.constant 0 : i32
    %c0_i32_1 = arith.constant 0 : i32
    return %c0_i32, %c0_i32_0 : i32, i32
  }
  func.func @transform_9(%arg0: i32) -> (i32, i32) {
    %c0_i32 = arith.constant 0 : i32
    %c0_i32_0 = arith.constant 0 : i32
    %c0_i32_1 = arith.constant 0 : i32
    return %c0_i32, %c0_i32_0 : i32, i32
  }
  func.func @transform_10(%arg0: i32) -> (i32, i32) {
    %c0_i32 = arith.constant 0 : i32
    %c0_i32_0 = arith.constant 0 : i32
    %c0_i32_1 = arith.constant 0 : i32
    return %c0_i32, %c0_i32_0 : i32, i32
  }
  func.func @transform_11(%arg0: i32) -> (i32, i32, i32) {
    %c0_i32 = arith.constant 0 : i32
    %c0_i32_0 = arith.constant 0 : i32
    %c0_i32_1 = arith.constant 0 : i32
    return %arg0, %c0_i32, %c0_i32_0 : i32, i32, i32
  }
}

</mosaic_0001>

<llo_original>
// kernel: squeeze.5
$region0: #{squeeze.5}
  %s0 = inlined_call_operand.vmem [shape: f32[7,7], index: 0, kind: input, shape index: {}]
  %s1 = inlined_call_operand.vmem [shape: f32[49], index: 1, kind: output, shape index: {}]
  $region1: #{squeeze.5} parent=0
    #allocation0 [shape = 'u8[4096]{0}', space=vmem, size = 0x1000, scoped, tag = 'scoped mem for output reshape']
    %v2 = vld [vmem:[%s0] sm:$0x1]
    %vm3 = vcmask 56320
    %4 = vst.msk [vmem:[#allocation0] sm:$0x1] %vm3, %v2
    %s5 = scalar_lea.vmem %s0, 6
    %v6 = vld [vmem:[%s5] sm:$0x1]
    %7 = vrot.lane.b32.xlu0 %v6, 42
    %v8 = vpop.permute.xlu0 %7
    %vm9 = vcmask 400720
    %10 = vst.msk [vmem:[#allocation0] sm:$0x1] %vm9, %v8
    %s11 = scalar_lea.vmem %s0, 5
    %v12 = vld [vmem:[%s11] sm:$0x1]
    %13 = vrot.lane.b32.xlu0 %v12, 35
    %v14 = vpop.permute.xlu0 %13
    %vm15 = vcmask 343320
    %16 = vst.msk [vmem:[#allocation0] sm:$0x1] %vm15, %v14
    %s17 = scalar_lea.vmem %s0, 4
    %v18 = vld [vmem:[%s17] sm:$0x1]
    %19 = vrot.lane.b32.xlu0 %v18, 28
    %v20 = vpop.permute.xlu0 %19
    %vm21 = vcmask 285920
    %22 = vst.msk [vmem:[#allocation0] sm:$0x1] %vm21, %v20
    %s23 = scalar_lea.vmem %s0, 3
    %v24 = vld [vmem:[%s23] sm:$0x1]
    %25 = vrot.lane.b32.xlu0 %v24, 21
    %v26 = vpop.permute.xlu0 %25
    %vm27 = vcmask 228520
    %28 = vst.msk [vmem:[#allocation0] sm:$0x1] %vm27, %v26
    %s29 = scalar_lea.vmem %s0, 2
    %v30 = vld [vmem:[%s29] sm:$0x1]
    %31 = vrot.lane.b32.xlu0 %v30, 14
    %v32 = vpop.permute.xlu0 %31
    %vm33 = vcmask 171120
    %34 = vst.msk [vmem:[#allocation0] sm:$0x1] %vm33, %v32
    %s35 = scalar_lea.vmem %s0, 1
    %v36 = vld [vmem:[%s35] sm:$0x1]
    %37 = vrot.lane.b32.xlu0 %v36, 7
    %v38 = vpop.permute.xlu0 %37
    %vm39 = vcmask 113720
    %40 = vst.msk [vmem:[#allocation0] sm:$0x1] %vm39, %v38
    %s42 = sshll.u32 1, 1
    %s43 = ssub.s32 %s42, 1
    %v45 = vld [vmem:[#allocation0] sm:%s43]
    %s46 = sshll.u32 1, 1
    %s47 = ssub.s32 %s46, 1
    %48 = vst [vmem:[%s1] sm:%s47] %v45

</llo_original>
